<compile_context>
chip_gen: v5e
topology: v5e:2x2
jax: 0.10.0
libtpu: 0.0.40
codegen_flags: <defaults>
</compile_context>

<pallas_src>
import functools
import math

import jax
import jax.numpy as jnp
from jax import lax
from jax.experimental import pallas as pl
from jax.experimental.pallas import tpu as pltpu


def mha_kernel(scale, num_heads,
               q_ref, k_ref, v_ref,
               w_qkv_ref, b_qkv_ref, wo_ref, bo_ref,
               o_ref,
               kv_ref):
    """Grid point (b, t): one query tile of one batch element, all heads.

    q_ref       : (1, TQ, E)   query-tile activations for batch b
    k_ref/v_ref : (1, S, E)    full key/value activations for batch b
    w_qkv_ref   : (3, H, E, D) head-major Wq/Wk/Wv slabs (VMEM-resident)
    b_qkv_ref   : (3, H, 1, D) head-major bq/bk/bv
    wo_ref      : (H, D, E)    head-major output-projection weight
    bo_ref      : (1, E)       output-projection bias
    o_ref       : (1, TQ, E)   output tile
    kv_ref      : (2, H, S, D) VMEM scratch: per-head K/V projections,
                               computed once per batch element (t == 0) and
                               reused across all query tiles of that element.
    """
    t = pl.program_id(1)
    TQ, E = q_ref.shape[1], q_ref.shape[2]

    # Project K and V for every head once per batch element; the scratch
    # persists across the (inner, "arbitrary") query-tile axis.
    @pl.when(t == 0)
    def _project_kv():
        xk = k_ref[0]                                           # (S, E)
        xv = v_ref[0]
        for h in range(num_heads):                              # static unroll
            kv_ref[0, h] = (jnp.dot(xk, w_qkv_ref[1, h],
                                    preferred_element_type=jnp.float32)
                            + b_qkv_ref[1, h])                  # (S, D)
            kv_ref[1, h] = (jnp.dot(xv, w_qkv_ref[2, h],
                                    preferred_element_type=jnp.float32)
                            + b_qkv_ref[2, h])                  # (S, D)

    xq = q_ref[0]                                               # (TQ, E)

    # Start the accumulator from the (broadcast) output-projection bias; each
    # head's contribution is added on top, and the tile is stored exactly once.
    out_acc = jnp.broadcast_to(bo_ref[...], (TQ, E)).astype(jnp.float32)

    for h in range(num_heads):
        # Per-head Q projection; fold 1/sqrt(depth) into q (TQ*D multiplies).
        qh = (jnp.dot(xq, w_qkv_ref[0, h], preferred_element_type=jnp.float32)
              + b_qkv_ref[0, h]) * scale                        # (TQ, D)
        kh = kv_ref[0, h]                                       # (S, D)
        vh = kv_ref[1, h]                                       # (S, D)

        # scores = qh @ kh^T without a materialized transpose: contract last
        # dims of both operands.
        scores = lax.dot_general(
            qh, kh,
            dimension_numbers=(((1,), (1,)), ((), ())),
            preferred_element_type=jnp.float32)                 # (TQ, S)

        # Numerically stable softmax; normalization applied AFTER the PV
        # matmul so the multiply is (TQ, D), not (TQ, S), and only one (TQ, S)
        # intermediate stays live.  Exact reciprocal (only TQ values).
        m = jnp.max(scores, axis=-1, keepdims=True)
        e = jnp.exp(scores - m)
        inv = pl.reciprocal(jnp.sum(e, axis=-1, keepdims=True), approx=False)
        ctx = jnp.dot(e, vh, preferred_element_type=jnp.float32) * inv  # (TQ,D)

        out_acc = out_acc + jnp.dot(ctx, wo_ref[h],
                                    preferred_element_type=jnp.float32)

    o_ref[0] = out_acc.astype(o_ref.dtype)


def _pick_q_tile(seq_len):
    """Largest 'nice' query tile that divides S; full S for small/odd sizes."""
    for tq in (512, 256, 128):
        if seq_len % tq == 0:
            return tq
    # TODO(synk): pad/ragged handling for long S not divisible by 128.
    return seq_len


def multi_head_attention(q, k, v, params, num_heads):
    """q, k, v: (B, S, E) float32. params: nn.Linear-style weights/biases."""
    B, S, E = q.shape
    assert E % num_heads == 0
    H = num_heads
    D = E // H
    TQ = _pick_q_tile(S)
    T = S // TQ

    # nn.Linear computes y = x @ W.T + b with W: (E_out, E_in).
    # Head-major projection weights: (H, E_in, D) so head h's slab is a full,
    # lane-dense (E, D) tile selected purely by static leading-dim indexing.
    def proj_head_major(w):                        # (E_out, E_in) -> (H, E_in, D)
        return jnp.transpose(w.T.reshape(E, H, D), (1, 0, 2))

    w_qkv = jnp.stack([proj_head_major(params["wq"]),
                       proj_head_major(params["wk"]),
                       proj_head_major(params["wv"])], axis=0)   # (3, H, E, D)
    b_qkv = jnp.stack([params["bq"].reshape(H, 1, D),
                       params["bk"].reshape(H, 1, D),
                       params["bv"].reshape(H, 1, D)], axis=0)   # (3, H, 1, D)

    # Output projection: out = ctx @ Wo.T = sum_h ctx_h @ Wo.T[h*D:(h+1)*D, :].
    wo_h = params["wo"].T.reshape(H, D, E)                       # (H, D, E)
    bo = params["bo"].reshape(1, E)

    kernel = functools.partial(mha_kernel, 1.0 / math.sqrt(D), H)

    # Activations: q is tiled along the query axis; k/v blocks are constant
    # over the query-tile axis so they are fetched once per batch element.
    q_spec = pl.BlockSpec((1, TQ, E), lambda b, t: (b, t, 0))
    kv_in_spec = pl.BlockSpec((1, S, E), lambda b, t: (b, 0, 0))
    # Weights: full-array blocks with constant index maps -> loaded into VMEM
    # exactly once and resident for the whole grid.
    w_qkv_spec = pl.BlockSpec((3, H, E, D), lambda b, t: (0, 0, 0, 0))
    b_qkv_spec = pl.BlockSpec((3, H, 1, D), lambda b, t: (0, 0, 0, 0))
    wo_spec = pl.BlockSpec((H, D, E), lambda b, t: (0, 0, 0))
    bo_spec = pl.BlockSpec((1, E), lambda b, t: (0, 0))
    out_spec = pl.BlockSpec((1, TQ, E), lambda b, t: (b, t, 0))

    # Explicit scoped-VMEM budget (v5e default is only 16 MiB): resident
    # weights + K/V scratch + double-buffered activation/output blocks + slack.
    f32 = 4
    resident = f32 * (3 * H * E * D + 3 * H * D + H * D * E + E + 2 * H * S * D)
    pipelined = f32 * 2 * (2 * TQ * E + 2 * S * E)
    working = f32 * (2 * TQ * S + 4 * TQ * E + 4 * TQ * D)
    vmem_limit = int(min(64 * 2**20, max(32 * 2**20, 2 * (resident + pipelined + working))))

    return pl.pallas_call(
        kernel,
        out_shape=jax.ShapeDtypeStruct((B, S, E), q.dtype),
        grid_spec=pltpu.PrefetchScalarGridSpec(
            num_scalar_prefetch=0,
            grid=(B, T),
            in_specs=[q_spec, kv_in_spec, kv_in_spec,
                      w_qkv_spec, b_qkv_spec, wo_spec, bo_spec],
            out_specs=out_spec,
            scratch_shapes=[pltpu.VMEM((2, H, S, D), jnp.float32)],
        ),
        compiler_params=pltpu.CompilerParams(
            # Batch axis: parallel (megacore / v7x 2-TC). Query-tile axis:
            # arbitrary (it carries the per-batch K/V scratch dependency).
            dimension_semantics=("parallel", "arbitrary"),
            vmem_limit_bytes=vmem_limit,
        ),
    )(q, k, v, w_qkv, b_qkv, wo_h, bo)


def _reference(q, k, v, params, num_heads):
    """Pure-JAX reference mirroring the PyTorch forward (mask=None)."""
    B, S, E = q.shape
    depth = E // num_heads

    def lin(x, w, b):
        return x @ w.T + b

    def split(x):  # (B, S, E) -> (B, H, S, D)
        return x.reshape(B, S, num_heads, depth).transpose(0, 2, 1, 3)

    qh = split(lin(q, params["wq"], params["bq"]))
    kh = split(lin(k, params["wk"], params["bk"]))
    vh = split(lin(v, params["wv"], params["bv"]))
    scores = jnp.einsum("bhqd,bhkd->bhqk", qh, kh) / math.sqrt(depth)
    w = jax.nn.softmax(scores, axis=-1)
    ctx = jnp.einsum("bhqk,bhkd->bhqd", w, vh)
    ctx = ctx.transpose(0, 2, 1, 3).reshape(B, S, E)
    return lin(ctx, params["wo"], params["bo"])


if __name__ == "__main__":
    # Small deterministic problem: batch=2, seq=8, embed=32, heads=4.
    B, S, E, H = 2, 8, 32, 4

    key = jax.random.PRNGKey(0)
    keys = jax.random.split(key, 11)

    bound = 1.0 / math.sqrt(E)  # nn.Linear default init range
    params = {
        "wq": jax.random.uniform(keys[0], (E, E), jnp.float32, -bound, bound),
        "bq": jax.random.uniform(keys[1], (E,), jnp.float32, -bound, bound),
        "wk": jax.random.uniform(keys[2], (E, E), jnp.float32, -bound, bound),
        "bk": jax.random.uniform(keys[3], (E,), jnp.float32, -bound, bound),
        "wv": jax.random.uniform(keys[4], (E, E), jnp.float32, -bound, bound),
        "bv": jax.random.uniform(keys[5], (E,), jnp.float32, -bound, bound),
        "wo": jax.random.uniform(keys[6], (E, E), jnp.float32, -bound, bound),
        "bo": jax.random.uniform(keys[7], (E,), jnp.float32, -bound, bound),
    }

    q = jax.random.normal(keys[8], (B, S, E), jnp.float32)
    k = jax.random.normal(keys[9], (B, S, E), jnp.float32)
    v = jax.random.normal(keys[10], (B, S, E), jnp.float32)

    out = multi_head_attention(q, k, v, params, H)
    out = jax.block_until_ready(out)

    ref = _reference(q, k, v, params, H)
    assert out.shape == (B, S, E)
    # Exact-reciprocal softmax normalization: tolerance tightened vs. rev 2
    # (only f32 associativity differences remain).
    assert jnp.allclose(out, ref, atol=1e-4, rtol=1e-4), "mismatch vs reference"

    print("KERNEL_OK")
</pallas_src>

<mosaic_0001>
module attributes {stable_mosaic.version = 11 : i64} {
  func.func @mha_kernel(%arg0: i32, %arg1: i32, %arg2: memref<1x8x32xf32, #tpu.memory_space<vmem>>, %arg3: memref<1x8x32xf32, #tpu.memory_space<vmem>>, %arg4: memref<1x8x32xf32, #tpu.memory_space<vmem>>, %arg5: memref<3x4x32x8xf32, #tpu.memory_space<vmem>>, %arg6: memref<3x4x1x8xf32, #tpu.memory_space<vmem>>, %arg7: memref<4x8x32xf32, #tpu.memory_space<vmem>>, %arg8: memref<1x32xf32, #tpu.memory_space<vmem>>, %arg9: memref<1x8x32xf32, #tpu.memory_space<vmem>>, %arg10: memref<2x4x8x8xf32, #tpu.memory_space<vmem>>) attributes {dimension_semantics = [#tpu.dimension_semantics<parallel>, #tpu.dimension_semantics<arbitrary>], iteration_bounds = array<i64: 2, 1>, scalar_prefetch = 0 : i64, scratch_operands = 1 : i64, tpu.core_type = #tpu.core_type<tc>, window_params = [{transform_indices = @transform_0, window_bounds = array<i64: 1, 8, 32>}, {transform_indices = @transform_1, window_bounds = array<i64: 1, 8, 32>}, {transform_indices = @transform_2, window_bounds = array<i64: 1, 8, 32>}, {pipeline_mode = #tpu.pipeline_mode<synchronous>, transform_indices = @transform_3, window_bounds = array<i64: 3, 4, 32, 8>}, {pipeline_mode = #tpu.pipeline_mode<synchronous>, transform_indices = @transform_4, window_bounds = array<i64: 3, 4, 1, 8>}, {pipeline_mode = #tpu.pipeline_mode<synchronous>, transform_indices = @transform_5, window_bounds = array<i64: 4, 8, 32>}, {pipeline_mode = #tpu.pipeline_mode<synchronous>, transform_indices = @transform_6, window_bounds = array<i64: 1, 32>}, {transform_indices = @transform_7, window_bounds = array<i64: 1, 8, 32>}]} {
    %c0_i32 = arith.constant 0 : i32
    %0 = arith.cmpi eq, %arg1, %c0_i32 : i32
    %1 = arith.extui %0 : i1 to i32
    %c0_i32_0 = arith.constant 0 : i32
    %2 = arith.cmpi ne, %1, %c0_i32_0 : i32
    scf.if %2 {
      %c0_108 = arith.constant 0 : index
      %c0_109 = arith.constant 0 : index
      %c0_110 = arith.constant 0 : index
      %127 = vector.load %arg3[%c0_108, %c0_109, %c0_110] : memref<1x8x32xf32, #tpu.memory_space<vmem>>, vector<1x8x32xf32>
      %128 = vector.shape_cast %127 : vector<1x8x32xf32> to vector<8x32xf32>
      %c0_111 = arith.constant 0 : index
      %c0_112 = arith.constant 0 : index
      %c0_113 = arith.constant 0 : index
      %129 = vector.load %arg4[%c0_111, %c0_112, %c0_113] : memref<1x8x32xf32, #tpu.memory_space<vmem>>, vector<1x8x32xf32>
      %130 = vector.shape_cast %129 : vector<1x8x32xf32> to vector<8x32xf32>
      %c1_114 = arith.constant 1 : index
      %c0_115 = arith.constant 0 : index
      %c0_116 = arith.constant 0 : index
      %c0_117 = arith.constant 0 : index
      %131 = vector.load %arg5[%c1_114, %c0_115, %c0_116, %c0_117] : memref<3x4x32x8xf32, #tpu.memory_space<vmem>>, vector<1x1x32x8xf32>
      %132 = vector.shape_cast %131 : vector<1x1x32x8xf32> to vector<32x8xf32>
      %cst_118 = arith.constant dense<0.000000e+00> : vector<8x8xf32>
      %133 = tpu.matmul %128, %132, %cst_118 {dimension_numbers = #tpu.dot_dimension_numbers<[1], [0], [0], [1], [0, 0, 1, 1], [], []>} : vector<8x32xf32>, vector<32x8xf32>, vector<8x8xf32> -> vector<8x8xf32>
      %c1_119 = arith.constant 1 : index
      %c0_120 = arith.constant 0 : index
      %c0_121 = arith.constant 0 : index
      %c0_122 = arith.constant 0 : index
      %134 = vector.load %arg6[%c1_119, %c0_120, %c0_121, %c0_122] : memref<3x4x1x8xf32, #tpu.memory_space<vmem>>, vector<1x1x1x8xf32>
      %135 = vector.shape_cast %134 : vector<1x1x1x8xf32> to vector<1x8xf32>
      %136 = vector.broadcast %135 : vector<1x8xf32> to vector<8x8xf32>
      %137 = arith.addf %133, %136 : vector<8x8xf32>
      %c0_123 = arith.constant 0 : index
      %c0_124 = arith.constant 0 : index
      %c0_125 = arith.constant 0 : index
      %c0_126 = arith.constant 0 : index
      %138 = vector.load %arg10[%c0_123, %c0_124, %c0_125, %c0_126] : memref<2x4x8x8xf32, #tpu.memory_space<vmem>>, vector<1x1x8x8xf32>
      %139 = vector.shape_cast %138 : vector<1x1x8x8xf32> to vector<8x8xf32>
      %140 = vector.shape_cast %137 : vector<8x8xf32> to vector<1x1x8x8xf32>
      tpu.vector_store %arg10[%c0_123, %c0_124, %c0_125, %c0_126], %140 {strides = array<i32>} : memref<2x4x8x8xf32, #tpu.memory_space<vmem>>, vector<1x1x8x8xf32>,
      %c2_127 = arith.constant 2 : index
      %c0_128 = arith.constant 0 : index
      %c0_129 = arith.constant 0 : index
      %c0_130 = arith.constant 0 : index
      %141 = vector.load %arg5[%c2_127, %c0_128, %c0_129, %c0_130] : memref<3x4x32x8xf32, #tpu.memory_space<vmem>>, vector<1x1x32x8xf32>
      %142 = vector.shape_cast %141 : vector<1x1x32x8xf32> to vector<32x8xf32>
      %cst_131 = arith.constant dense<0.000000e+00> : vector<8x8xf32>
      %143 = tpu.matmul %130, %142, %cst_131 {dimension_numbers = #tpu.dot_dimension_numbers<[1], [0], [0], [1], [0, 0, 1, 1], [], []>} : vector<8x32xf32>, vector<32x8xf32>, vector<8x8xf32> -> vector<8x8xf32>
      %c2_132 = arith.constant 2 : index
      %c0_133 = arith.constant 0 : index
      %c0_134 = arith.constant 0 : index
      %c0_135 = arith.constant 0 : index
      %144 = vector.load %arg6[%c2_132, %c0_133, %c0_134, %c0_135] : memref<3x4x1x8xf32, #tpu.memory_space<vmem>>, vector<1x1x1x8xf32>
      %145 = vector.shape_cast %144 : vector<1x1x1x8xf32> to vector<1x8xf32>
      %146 = vector.broadcast %145 : vector<1x8xf32> to vector<8x8xf32>
      %147 = arith.addf %143, %146 : vector<8x8xf32>
      %c1_136 = arith.constant 1 : index
      %c0_137 = arith.constant 0 : index
      %c0_138 = arith.constant 0 : index
      %c0_139 = arith.constant 0 : index
      %148 = vector.load %arg10[%c1_136, %c0_137, %c0_138, %c0_139] : memref<2x4x8x8xf32, #tpu.memory_space<vmem>>, vector<1x1x8x8xf32>
      %149 = vector.shape_cast %148 : vector<1x1x8x8xf32> to vector<8x8xf32>
      %150 = vector.shape_cast %147 : vector<8x8xf32> to vector<1x1x8x8xf32>
      tpu.vector_store %arg10[%c1_136, %c0_137, %c0_138, %c0_139], %150 {strides = array<i32>} : memref<2x4x8x8xf32, #tpu.memory_space<vmem>>, vector<1x1x8x8xf32>,
      %c1_140 = arith.constant 1 : index
      %c1_141 = arith.constant 1 : index
      %c0_142 = arith.constant 0 : index
      %c0_143 = arith.constant 0 : index
      %151 = vector.load %arg5[%c1_140, %c1_141, %c0_142, %c0_143] : memref<3x4x32x8xf32, #tpu.memory_space<vmem>>, vector<1x1x32x8xf32>
      %152 = vector.shape_cast %151 : vector<1x1x32x8xf32> to vector<32x8xf32>
      %cst_144 = arith.constant dense<0.000000e+00> : vector<8x8xf32>
      %153 = tpu.matmul %128, %152, %cst_144 {dimension_numbers = #tpu.dot_dimension_numbers<[1], [0], [0], [1], [0, 0, 1, 1], [], []>} : vector<8x32xf32>, vector<32x8xf32>, vector<8x8xf32> -> vector<8x8xf32>
      %c1_145 = arith.constant 1 : index
      %c1_146 = arith.constant 1 : index
      %c0_147 = arith.constant 0 : index
      %c0_148 = arith.constant 0 : index
      %154 = vector.load %arg6[%c1_145, %c1_146, %c0_147, %c0_148] : memref<3x4x1x8xf32, #tpu.memory_space<vmem>>, vector<1x1x1x8xf32>
      %155 = vector.shape_cast %154 : vector<1x1x1x8xf32> to vector<1x8xf32>
      %156 = vector.broadcast %155 : vector<1x8xf32> to vector<8x8xf32>
      %157 = arith.addf %153, %156 : vector<8x8xf32>
      %c0_149 = arith.constant 0 : index
      %c1_150 = arith.constant 1 : index
      %c0_151 = arith.constant 0 : index
      %c0_152 = arith.constant 0 : index
      %158 = vector.load %arg10[%c0_149, %c1_150, %c0_151, %c0_152] : memref<2x4x8x8xf32, #tpu.memory_space<vmem>>, vector<1x1x8x8xf32>
      %159 = vector.shape_cast %158 : vector<1x1x8x8xf32> to vector<8x8xf32>
      %160 = vector.shape_cast %157 : vector<8x8xf32> to vector<1x1x8x8xf32>
      tpu.vector_store %arg10[%c0_149, %c1_150, %c0_151, %c0_152], %160 {strides = array<i32>} : memref<2x4x8x8xf32, #tpu.memory_space<vmem>>, vector<1x1x8x8xf32>,
      %c2_153 = arith.constant 2 : index
      %c1_154 = arith.constant 1 : index
      %c0_155 = arith.constant 0 : index
      %c0_156 = arith.constant 0 : index
      %161 = vector.load %arg5[%c2_153, %c1_154, %c0_155, %c0_156] : memref<3x4x32x8xf32, #tpu.memory_space<vmem>>, vector<1x1x32x8xf32>
      %162 = vector.shape_cast %161 : vector<1x1x32x8xf32> to vector<32x8xf32>
      %cst_157 = arith.constant dense<0.000000e+00> : vector<8x8xf32>
      %163 = tpu.matmul %130, %162, %cst_157 {dimension_numbers = #tpu.dot_dimension_numbers<[1], [0], [0], [1], [0, 0, 1, 1], [], []>} : vector<8x32xf32>, vector<32x8xf32>, vector<8x8xf32> -> vector<8x8xf32>
      %c2_158 = arith.constant 2 : index
      %c1_159 = arith.constant 1 : index
      %c0_160 = arith.constant 0 : index
      %c0_161 = arith.constant 0 : index
      %164 = vector.load %arg6[%c2_158, %c1_159, %c0_160, %c0_161] : memref<3x4x1x8xf32, #tpu.memory_space<vmem>>, vector<1x1x1x8xf32>
      %165 = vector.shape_cast %164 : vector<1x1x1x8xf32> to vector<1x8xf32>
      %166 = vector.broadcast %165 : vector<1x8xf32> to vector<8x8xf32>
      %167 = arith.addf %163, %166 : vector<8x8xf32>
      %c1_162 = arith.constant 1 : index
      %c1_163 = arith.constant 1 : index
      %c0_164 = arith.constant 0 : index
      %c0_165 = arith.constant 0 : index
      %168 = vector.load %arg10[%c1_162, %c1_163, %c0_164, %c0_165] : memref<2x4x8x8xf32, #tpu.memory_space<vmem>>, vector<1x1x8x8xf32>
      %169 = vector.shape_cast %168 : vector<1x1x8x8xf32> to vector<8x8xf32>
      %170 = vector.shape_cast %167 : vector<8x8xf32> to vector<1x1x8x8xf32>
      tpu.vector_store %arg10[%c1_162, %c1_163, %c0_164, %c0_165], %170 {strides = array<i32>} : memref<2x4x8x8xf32, #tpu.memory_space<vmem>>, vector<1x1x8x8xf32>,
      %c1_166 = arith.constant 1 : index
      %c2_167 = arith.constant 2 : index
      %c0_168 = arith.constant 0 : index
      %c0_169 = arith.constant 0 : index
      %171 = vector.load %arg5[%c1_166, %c2_167, %c0_168, %c0_169] : memref<3x4x32x8xf32, #tpu.memory_space<vmem>>, vector<1x1x32x8xf32>
      %172 = vector.shape_cast %171 : vector<1x1x32x8xf32> to vector<32x8xf32>
      %cst_170 = arith.constant dense<0.000000e+00> : vector<8x8xf32>
      %173 = tpu.matmul %128, %172, %cst_170 {dimension_numbers = #tpu.dot_dimension_numbers<[1], [0], [0], [1], [0, 0, 1, 1], [], []>} : vector<8x32xf32>, vector<32x8xf32>, vector<8x8xf32> -> vector<8x8xf32>
      %c1_171 = arith.constant 1 : index
      %c2_172 = arith.constant 2 : index
      %c0_173 = arith.constant 0 : index
      %c0_174 = arith.constant 0 : index
      %174 = vector.load %arg6[%c1_171, %c2_172, %c0_173, %c0_174] : memref<3x4x1x8xf32, #tpu.memory_space<vmem>>, vector<1x1x1x8xf32>
      %175 = vector.shape_cast %174 : vector<1x1x1x8xf32> to vector<1x8xf32>
      %176 = vector.broadcast %175 : vector<1x8xf32> to vector<8x8xf32>
      %177 = arith.addf %173, %176 : vector<8x8xf32>
      %c0_175 = arith.constant 0 : index
      %c2_176 = arith.constant 2 : index
      %c0_177 = arith.constant 0 : index
      %c0_178 = arith.constant 0 : index
      %178 = vector.load %arg10[%c0_175, %c2_176, %c0_177, %c0_178] : memref<2x4x8x8xf32, #tpu.memory_space<vmem>>, vector<1x1x8x8xf32>
      %179 = vector.shape_cast %178 : vector<1x1x8x8xf32> to vector<8x8xf32>
      %180 = vector.shape_cast %177 : vector<8x8xf32> to vector<1x1x8x8xf32>
      tpu.vector_store %arg10[%c0_175, %c2_176, %c0_177, %c0_178], %180 {strides = array<i32>} : memref<2x4x8x8xf32, #tpu.memory_space<vmem>>, vector<1x1x8x8xf32>,
      %c2_179 = arith.constant 2 : index
      %c2_180 = arith.constant 2 : index
      %c0_181 = arith.constant 0 : index
      %c0_182 = arith.constant 0 : index
      %181 = vector.load %arg5[%c2_179, %c2_180, %c0_181, %c0_182] : memref<3x4x32x8xf32, #tpu.memory_space<vmem>>, vector<1x1x32x8xf32>
      %182 = vector.shape_cast %181 : vector<1x1x32x8xf32> to vector<32x8xf32>
      %cst_183 = arith.constant dense<0.000000e+00> : vector<8x8xf32>
      %183 = tpu.matmul %130, %182, %cst_183 {dimension_numbers = #tpu.dot_dimension_numbers<[1], [0], [0], [1], [0, 0, 1, 1], [], []>} : vector<8x32xf32>, vector<32x8xf32>, vector<8x8xf32> -> vector<8x8xf32>
      %c2_184 = arith.constant 2 : index
      %c2_185 = arith.constant 2 : index
      %c0_186 = arith.constant 0 : index
      %c0_187 = arith.constant 0 : index
      %184 = vector.load %arg6[%c2_184, %c2_185, %c0_186, %c0_187] : memref<3x4x1x8xf32, #tpu.memory_space<vmem>>, vector<1x1x1x8xf32>
      %185 = vector.shape_cast %184 : vector<1x1x1x8xf32> to vector<1x8xf32>
      %186 = vector.broadcast %185 : vector<1x8xf32> to vector<8x8xf32>
      %187 = arith.addf %183, %186 : vector<8x8xf32>
      %c1_188 = arith.constant 1 : index
      %c2_189 = arith.constant 2 : index
      %c0_190 = arith.constant 0 : index
      %c0_191 = arith.constant 0 : index
      %188 = vector.load %arg10[%c1_188, %c2_189, %c0_190, %c0_191] : memref<2x4x8x8xf32, #tpu.memory_space<vmem>>, vector<1x1x8x8xf32>
      %189 = vector.shape_cast %188 : vector<1x1x8x8xf32> to vector<8x8xf32>
      %190 = vector.shape_cast %187 : vector<8x8xf32> to vector<1x1x8x8xf32>
      tpu.vector_store %arg10[%c1_188, %c2_189, %c0_190, %c0_191], %190 {strides = array<i32>} : memref<2x4x8x8xf32, #tpu.memory_space<vmem>>, vector<1x1x8x8xf32>,
      %c1_192 = arith.constant 1 : index
      %c3_193 = arith.constant 3 : index
      %c0_194 = arith.constant 0 : index
      %c0_195 = arith.constant 0 : index
      %191 = vector.load %arg5[%c1_192, %c3_193, %c0_194, %c0_195] : memref<3x4x32x8xf32, #tpu.memory_space<vmem>>, vector<1x1x32x8xf32>
      %192 = vector.shape_cast %191 : vector<1x1x32x8xf32> to vector<32x8xf32>
      %cst_196 = arith.constant dense<0.000000e+00> : vector<8x8xf32>
      %193 = tpu.matmul %128, %192, %cst_196 {dimension_numbers = #tpu.dot_dimension_numbers<[1], [0], [0], [1], [0, 0, 1, 1], [], []>} : vector<8x32xf32>, vector<32x8xf32>, vector<8x8xf32> -> vector<8x8xf32>
      %c1_197 = arith.constant 1 : index
      %c3_198 = arith.constant 3 : index
      %c0_199 = arith.constant 0 : index
      %c0_200 = arith.constant 0 : index
      %194 = vector.load %arg6[%c1_197, %c3_198, %c0_199, %c0_200] : memref<3x4x1x8xf32, #tpu.memory_space<vmem>>, vector<1x1x1x8xf32>
      %195 = vector.shape_cast %194 : vector<1x1x1x8xf32> to vector<1x8xf32>
      %196 = vector.broadcast %195 : vector<1x8xf32> to vector<8x8xf32>
      %197 = arith.addf %193, %196 : vector<8x8xf32>
      %c0_201 = arith.constant 0 : index
      %c3_202 = arith.constant 3 : index
      %c0_203 = arith.constant 0 : index
      %c0_204 = arith.constant 0 : index
      %198 = vector.load %arg10[%c0_201, %c3_202, %c0_203, %c0_204] : memref<2x4x8x8xf32, #tpu.memory_space<vmem>>, vector<1x1x8x8xf32>
      %199 = vector.shape_cast %198 : vector<1x1x8x8xf32> to vector<8x8xf32>
      %200 = vector.shape_cast %197 : vector<8x8xf32> to vector<1x1x8x8xf32>
      tpu.vector_store %arg10[%c0_201, %c3_202, %c0_203, %c0_204], %200 {strides = array<i32>} : memref<2x4x8x8xf32, #tpu.memory_space<vmem>>, vector<1x1x8x8xf32>,
      %c2_205 = arith.constant 2 : index
      %c3_206 = arith.constant 3 : index
      %c0_207 = arith.constant 0 : index
      %c0_208 = arith.constant 0 : index
      %201 = vector.load %arg5[%c2_205, %c3_206, %c0_207, %c0_208] : memref<3x4x32x8xf32, #tpu.memory_space<vmem>>, vector<1x1x32x8xf32>
      %202 = vector.shape_cast %201 : vector<1x1x32x8xf32> to vector<32x8xf32>
      %cst_209 = arith.constant dense<0.000000e+00> : vector<8x8xf32>
      %203 = tpu.matmul %130, %202, %cst_209 {dimension_numbers = #tpu.dot_dimension_numbers<[1], [0], [0], [1], [0, 0, 1, 1], [], []>} : vector<8x32xf32>, vector<32x8xf32>, vector<8x8xf32> -> vector<8x8xf32>
      %c2_210 = arith.constant 2 : index
      %c3_211 = arith.constant 3 : index
      %c0_212 = arith.constant 0 : index
      %c0_213 = arith.constant 0 : index
      %204 = vector.load %arg6[%c2_210, %c3_211, %c0_212, %c0_213] : memref<3x4x1x8xf32, #tpu.memory_space<vmem>>, vector<1x1x1x8xf32>
      %205 = vector.shape_cast %204 : vector<1x1x1x8xf32> to vector<1x8xf32>
      %206 = vector.broadcast %205 : vector<1x8xf32> to vector<8x8xf32>
      %207 = arith.addf %203, %206 : vector<8x8xf32>
      %c1_214 = arith.constant 1 : index
      %c3_215 = arith.constant 3 : index
      %c0_216 = arith.constant 0 : index
      %c0_217 = arith.constant 0 : index
      %208 = vector.load %arg10[%c1_214, %c3_215, %c0_216, %c0_217] : memref<2x4x8x8xf32, #tpu.memory_space<vmem>>, vector<1x1x8x8xf32>
      %209 = vector.shape_cast %208 : vector<1x1x8x8xf32> to vector<8x8xf32>
      %210 = vector.shape_cast %207 : vector<8x8xf32> to vector<1x1x8x8xf32>
      tpu.vector_store %arg10[%c1_214, %c3_215, %c0_216, %c0_217], %210 {strides = array<i32>} : memref<2x4x8x8xf32, #tpu.memory_space<vmem>>, vector<1x1x8x8xf32>,
    } else {
    }
    %c0 = arith.constant 0 : index
    %c0_1 = arith.constant 0 : index
    %c0_2 = arith.constant 0 : index
    %3 = vector.load %arg2[%c0, %c0_1, %c0_2] : memref<1x8x32xf32, #tpu.memory_space<vmem>>, vector<1x8x32xf32>
    %4 = vector.shape_cast %3 : vector<1x8x32xf32> to vector<8x32xf32>
    %c0_3 = arith.constant 0 : index
    %c0_4 = arith.constant 0 : index
    %5 = vector.load %arg8[%c0_3, %c0_4] : memref<1x32xf32, #tpu.memory_space<vmem>>, vector<1x32xf32>
    %6 = vector.shape_cast %5 : vector<1x32xf32> to vector<1x32xf32>
    %7 = vector.broadcast %6 : vector<1x32xf32> to vector<8x32xf32>
    %c0_5 = arith.constant 0 : index
    %c0_6 = arith.constant 0 : index
    %c0_7 = arith.constant 0 : index
    %c0_8 = arith.constant 0 : index
    %8 = vector.load %arg5[%c0_5, %c0_6, %c0_7, %c0_8] : memref<3x4x32x8xf32, #tpu.memory_space<vmem>>, vector<1x1x32x8xf32>
    %9 = vector.shape_cast %8 : vector<1x1x32x8xf32> to vector<32x8xf32>
    %cst = arith.constant dense<0.000000e+00> : vector<8x8xf32>
    %10 = tpu.matmul %4, %9, %cst {dimension_numbers = #tpu.dot_dimension_numbers<[1], [0], [0], [1], [0, 0, 1, 1], [], []>} : vector<8x32xf32>, vector<32x8xf32>, vector<8x8xf32> -> vector<8x8xf32>
    %c0_9 = arith.constant 0 : index
    %c0_10 = arith.constant 0 : index
    %c0_11 = arith.constant 0 : index
    %c0_12 = arith.constant 0 : index
    %11 = vector.load %arg6[%c0_9, %c0_10, %c0_11, %c0_12] : memref<3x4x1x8xf32, #tpu.memory_space<vmem>>, vector<1x1x1x8xf32>
    %12 = vector.shape_cast %11 : vector<1x1x1x8xf32> to vector<1x8xf32>
    %13 = vector.broadcast %12 : vector<1x8xf32> to vector<8x8xf32>
    %14 = arith.addf %10, %13 : vector<8x8xf32>
    %cst_13 = arith.constant 0.353553385 : f32
    %15 = vector.broadcast %cst_13 : f32 to vector<8x8xf32>
    %16 = arith.mulf %14, %15 : vector<8x8xf32>
    %c0_14 = arith.constant 0 : index
    %c0_15 = arith.constant 0 : index
    %c0_16 = arith.constant 0 : index
    %c0_17 = arith.constant 0 : index
    %17 = vector.load %arg10[%c0_14, %c0_15, %c0_16, %c0_17] : memref<2x4x8x8xf32, #tpu.memory_space<vmem>>, vector<1x1x8x8xf32>
    %18 = vector.shape_cast %17 : vector<1x1x8x8xf32> to vector<8x8xf32>
    %c1 = arith.constant 1 : index
    %c0_18 = arith.constant 0 : index
    %c0_19 = arith.constant 0 : index
    %c0_20 = arith.constant 0 : index
    %19 = vector.load %arg10[%c1, %c0_18, %c0_19, %c0_20] : memref<2x4x8x8xf32, #tpu.memory_space<vmem>>, vector<1x1x8x8xf32>
    %20 = vector.shape_cast %19 : vector<1x1x8x8xf32> to vector<8x8xf32>
    %cst_21 = arith.constant dense<0.000000e+00> : vector<8x8xf32>
    %21 = tpu.matmul %16, %18, %cst_21 {dimension_numbers = #tpu.dot_dimension_numbers<[1], [1], [0], [0], [0, 0, 1, 0], [], []>} : vector<8x8xf32>, vector<8x8xf32>, vector<8x8xf32> -> vector<8x8xf32>
    %cst_22 = arith.constant dense<0xFF800000> : vector<8xf32>
    %22 = vector.multi_reduction <maximumf>, %21, %cst_22 [1] : vector<8x8xf32> to vector<8xf32>
    %23 = vector.shape_cast %22 : vector<8xf32> to vector<8x1xf32>
    %24 = vector.broadcast %23 : vector<8x1xf32> to vector<8x8xf32>
    %25 = arith.subf %21, %24 : vector<8x8xf32>
    %26 = math.exp %25 : vector<8x8xf32>
    %cst_23 = arith.constant dense<0.000000e+00> : vector<8xf32>
    %27 = vector.multi_reduction <add>, %26, %cst_23 [1] : vector<8x8xf32> to vector<8xf32>
    %28 = vector.shape_cast %27 : vector<8xf32> to vector<8x1xf32>
    %29 = tpu.reciprocal %28 : vector<8x1xf32> -> vector<8x1xf32>
    %cst_24 = arith.constant dense<0.000000e+00> : vector<8x8xf32>
    %30 = tpu.matmul %26, %20, %cst_24 {dimension_numbers = #tpu.dot_dimension_numbers<[1], [0], [0], [1], [0, 0, 1, 1], [], []>} : vector<8x8xf32>, vector<8x8xf32>, vector<8x8xf32> -> vector<8x8xf32>
    %31 = vector.broadcast %29 : vector<8x1xf32> to vector<8x8xf32>
    %32 = arith.mulf %30, %31 : vector<8x8xf32>
    %c0_25 = arith.constant 0 : index
    %c0_26 = arith.constant 0 : index
    %c0_27 = arith.constant 0 : index
    %33 = vector.load %arg7[%c0_25, %c0_26, %c0_27] : memref<4x8x32xf32, #tpu.memory_space<vmem>>, vector<1x8x32xf32>
    %34 = vector.shape_cast %33 : vector<1x8x32xf32> to vector<8x32xf32>
    %cst_28 = arith.constant dense<0.000000e+00> : vector<8x32xf32>
    %35 = tpu.matmul %32, %34, %cst_28 {dimension_numbers = #tpu.dot_dimension_numbers<[1], [0], [0], [1], [0, 0, 1, 1], [], []>} : vector<8x8xf32>, vector<8x32xf32>, vector<8x32xf32> -> vector<8x32xf32>
    %36 = arith.addf %7, %35 : vector<8x32xf32>
    %c0_29 = arith.constant 0 : index
    %c1_30 = arith.constant 1 : index
    %c0_31 = arith.constant 0 : index
    %c0_32 = arith.constant 0 : index
    %37 = vector.load %arg5[%c0_29, %c1_30, %c0_31, %c0_32] : memref<3x4x32x8xf32, #tpu.memory_space<vmem>>, vector<1x1x32x8xf32>
    %38 = vector.shape_cast %37 : vector<1x1x32x8xf32> to vector<32x8xf32>
    %cst_33 = arith.constant dense<0.000000e+00> : vector<8x8xf32>
    %39 = tpu.matmul %4, %38, %cst_33 {dimension_numbers = #tpu.dot_dimension_numbers<[1], [0], [0], [1], [0, 0, 1, 1], [], []>} : vector<8x32xf32>, vector<32x8xf32>, vector<8x8xf32> -> vector<8x8xf32>
    %c0_34 = arith.constant 0 : index
    %c1_35 = arith.constant 1 : index
    %c0_36 = arith.constant 0 : index
    %c0_37 = arith.constant 0 : index
    %40 = vector.load %arg6[%c0_34, %c1_35, %c0_36, %c0_37] : memref<3x4x1x8xf32, #tpu.memory_space<vmem>>, vector<1x1x1x8xf32>
    %41 = vector.shape_cast %40 : vector<1x1x1x8xf32> to vector<1x8xf32>
    %42 = vector.broadcast %41 : vector<1x8xf32> to vector<8x8xf32>
    %43 = arith.addf %39, %42 : vector<8x8xf32>
    %cst_38 = arith.constant 0.353553385 : f32
    %44 = vector.broadcast %cst_38 : f32 to vector<8x8xf32>
    %45 = arith.mulf %43, %44 : vector<8x8xf32>
    %c0_39 = arith.constant 0 : index
    %c1_40 = arith.constant 1 : index
    %c0_41 = arith.constant 0 : index
    %c0_42 = arith.constant 0 : index
    %46 = vector.load %arg10[%c0_39, %c1_40, %c0_41, %c0_42] : memref<2x4x8x8xf32, #tpu.memory_space<vmem>>, vector<1x1x8x8xf32>
    %47 = vector.shape_cast %46 : vector<1x1x8x8xf32> to vector<8x8xf32>
    %c1_43 = arith.constant 1 : index
    %c1_44 = arith.constant 1 : index
    %c0_45 = arith.constant 0 : index
    %c0_46 = arith.constant 0 : index
    %48 = vector.load %arg10[%c1_43, %c1_44, %c0_45, %c0_46] : memref<2x4x8x8xf32, #tpu.memory_space<vmem>>, vector<1x1x8x8xf32>
    %49 = vector.shape_cast %48 : vector<1x1x8x8xf32> to vector<8x8xf32>
    %cst_47 = arith.constant dense<0.000000e+00> : vector<8x8xf32>
    %50 = tpu.matmul %45, %47, %cst_47 {dimension_numbers = #tpu.dot_dimension_numbers<[1], [1], [0], [0], [0, 0, 1, 0], [], []>} : vector<8x8xf32>, vector<8x8xf32>, vector<8x8xf32> -> vector<8x8xf32>
    %cst_48 = arith.constant dense<0xFF800000> : vector<8xf32>
    %51 = vector.multi_reduction <maximumf>, %50, %cst_48 [1] : vector<8x8xf32> to vector<8xf32>
    %52 = vector.shape_cast %51 : vector<8xf32> to vector<8x1xf32>
    %53 = vector.broadcast %52 : vector<8x1xf32> to vector<8x8xf32>
    %54 = arith.subf %50, %53 : vector<8x8xf32>
    %55 = math.exp %54 : vector<8x8xf32>
    %cst_49 = arith.constant dense<0.000000e+00> : vector<8xf32>
    %56 = vector.multi_reduction <add>, %55, %cst_49 [1] : vector<8x8xf32> to vector<8xf32>
    %57 = vector.shape_cast %56 : vector<8xf32> to vector<8x1xf32>
    %58 = tpu.reciprocal %57 : vector<8x1xf32> -> vector<8x1xf32>
    %cst_50 = arith.constant dense<0.000000e+00> : vector<8x8xf32>
    %59 = tpu.matmul %55, %49, %cst_50 {dimension_numbers = #tpu.dot_dimension_numbers<[1], [0], [0], [1], [0, 0, 1, 1], [], []>} : vector<8x8xf32>, vector<8x8xf32>, vector<8x8xf32> -> vector<8x8xf32>
    %60 = vector.broadcast %58 : vector<8x1xf32> to vector<8x8xf32>
    %61 = arith.mulf %59, %60 : vector<8x8xf32>
    %c1_51 = arith.constant 1 : index
    %c0_52 = arith.constant 0 : index
    %c0_53 = arith.constant 0 : index
    %62 = vector.load %arg7[%c1_51, %c0_52, %c0_53] : memref<4x8x32xf32, #tpu.memory_space<vmem>>, vector<1x8x32xf32>
    %63 = vector.shape_cast %62 : vector<1x8x32xf32> to vector<8x32xf32>
    %cst_54 = arith.constant dense<0.000000e+00> : vector<8x32xf32>
    %64 = tpu.matmul %61, %63, %cst_54 {dimension_numbers = #tpu.dot_dimension_numbers<[1], [0], [0], [1], [0, 0, 1, 1], [], []>} : vector<8x8xf32>, vector<8x32xf32>, vector<8x32xf32> -> vector<8x32xf32>
    %65 = arith.addf %36, %64 : vector<8x32xf32>
    %c0_55 = arith.constant 0 : index
    %c2 = arith.constant 2 : index
    %c0_56 = arith.constant 0 : index
    %c0_57 = arith.constant 0 : index
    %66 = vector.load %arg5[%c0_55, %c2, %c0_56, %c0_57] : memref<3x4x32x8xf32, #tpu.memory_space<vmem>>, vector<1x1x32x8xf32>
    %67 = vector.shape_cast %66 : vector<1x1x32x8xf32> to vector<32x8xf32>
    %cst_58 = arith.constant dense<0.000000e+00> : vector<8x8xf32>
    %68 = tpu.matmul %4, %67, %cst_58 {dimension_numbers = #tpu.dot_dimension_numbers<[1], [0], [0], [1], [0, 0, 1, 1], [], []>} : vector<8x32xf32>, vector<32x8xf32>, vector<8x8xf32> -> vector<8x8xf32>
    %c0_59 = arith.constant 0 : index
    %c2_60 = arith.constant 2 : index
    %c0_61 = arith.constant 0 : index
    %c0_62 = arith.constant 0 : index
    %69 = vector.load %arg6[%c0_59, %c2_60, %c0_61, %c0_62] : memref<3x4x1x8xf32, #tpu.memory_space<vmem>>, vector<1x1x1x8xf32>
    %70 = vector.shape_cast %69 : vector<1x1x1x8xf32> to vector<1x8xf32>
    %71 = vector.broadcast %70 : vector<1x8xf32> to vector<8x8xf32>
    %72 = arith.addf %68, %71 : vector<8x8xf32>
    %cst_63 = arith.constant 0.353553385 : f32
    %73 = vector.broadcast %cst_63 : f32 to vector<8x8xf32>
    %74 = arith.mulf %72, %73 : vector<8x8xf32>
    %c0_64 = arith.constant 0 : index
    %c2_65 = arith.constant 2 : index
    %c0_66 = arith.constant 0 : index
    %c0_67 = arith.constant 0 : index
    %75 = vector.load %arg10[%c0_64, %c2_65, %c0_66, %c0_67] : memref<2x4x8x8xf32, #tpu.memory_space<vmem>>, vector<1x1x8x8xf32>
    %76 = vector.shape_cast %75 : vector<1x1x8x8xf32> to vector<8x8xf32>
    %c1_68 = arith.constant 1 : index
    %c2_69 = arith.constant 2 : index
    %c0_70 = arith.constant 0 : index
    %c0_71 = arith.constant 0 : index
    %77 = vector.load %arg10[%c1_68, %c2_69, %c0_70, %c0_71] : memref<2x4x8x8xf32, #tpu.memory_space<vmem>>, vector<1x1x8x8xf32>
    %78 = vector.shape_cast %77 : vector<1x1x8x8xf32> to vector<8x8xf32>
    %cst_72 = arith.constant dense<0.000000e+00> : vector<8x8xf32>
    %79 = tpu.matmul %74, %76, %cst_72 {dimension_numbers = #tpu.dot_dimension_numbers<[1], [1], [0], [0], [0, 0, 1, 0], [], []>} : vector<8x8xf32>, vector<8x8xf32>, vector<8x8xf32> -> vector<8x8xf32>
    %cst_73 = arith.constant dense<0xFF800000> : vector<8xf32>
    %80 = vector.multi_reduction <maximumf>, %79, %cst_73 [1] : vector<8x8xf32> to vector<8xf32>
    %81 = vector.shape_cast %80 : vector<8xf32> to vector<8x1xf32>
    %82 = vector.broadcast %81 : vector<8x1xf32> to vector<8x8xf32>
    %83 = arith.subf %79, %82 : vector<8x8xf32>
    %84 = math.exp %83 : vector<8x8xf32>
    %cst_74 = arith.constant dense<0.000000e+00> : vector<8xf32>
    %85 = vector.multi_reduction <add>, %84, %cst_74 [1] : vector<8x8xf32> to vector<8xf32>
    %86 = vector.shape_cast %85 : vector<8xf32> to vector<8x1xf32>
    %87 = tpu.reciprocal %86 : vector<8x1xf32> -> vector<8x1xf32>
    %cst_75 = arith.constant dense<0.000000e+00> : vector<8x8xf32>
    %88 = tpu.matmul %84, %78, %cst_75 {dimension_numbers = #tpu.dot_dimension_numbers<[1], [0], [0], [1], [0, 0, 1, 1], [], []>} : vector<8x8xf32>, vector<8x8xf32>, vector<8x8xf32> -> vector<8x8xf32>
    %89 = vector.broadcast %87 : vector<8x1xf32> to vector<8x8xf32>
    %90 = arith.mulf %88, %89 : vector<8x8xf32>
    %c2_76 = arith.constant 2 : index
    %c0_77 = arith.constant 0 : index
    %c0_78 = arith.constant 0 : index
    %91 = vector.load %arg7[%c2_76, %c0_77, %c0_78] : memref<4x8x32xf32, #tpu.memory_space<vmem>>, vector<1x8x32xf32>
    %92 = vector.shape_cast %91 : vector<1x8x32xf32> to vector<8x32xf32>
    %cst_79 = arith.constant dense<0.000000e+00> : vector<8x32xf32>
    %93 = tpu.matmul %90, %92, %cst_79 {dimension_numbers = #tpu.dot_dimension_numbers<[1], [0], [0], [1], [0, 0, 1, 1], [], []>} : vector<8x8xf32>, vector<8x32xf32>, vector<8x32xf32> -> vector<8x32xf32>
    %94 = arith.addf %65, %93 : vector<8x32xf32>
    %c0_80 = arith.constant 0 : index
    %c3 = arith.constant 3 : index
    %c0_81 = arith.constant 0 : index
    %c0_82 = arith.constant 0 : index
    %95 = vector.load %arg5[%c0_80, %c3, %c0_81, %c0_82] : memref<3x4x32x8xf32, #tpu.memory_space<vmem>>, vector<1x1x32x8xf32>
    %96 = vector.shape_cast %95 : vector<1x1x32x8xf32> to vector<32x8xf32>
    %cst_83 = arith.constant dense<0.000000e+00> : vector<8x8xf32>
    %97 = tpu.matmul %4, %96, %cst_83 {dimension_numbers = #tpu.dot_dimension_numbers<[1], [0], [0], [1], [0, 0, 1, 1], [], []>} : vector<8x32xf32>, vector<32x8xf32>, vector<8x8xf32> -> vector<8x8xf32>
    %c0_84 = arith.constant 0 : index
    %c3_85 = arith.constant 3 : index
    %c0_86 = arith.constant 0 : index
    %c0_87 = arith.constant 0 : index
    %98 = vector.load %arg6[%c0_84, %c3_85, %c0_86, %c0_87] : memref<3x4x1x8xf32, #tpu.memory_space<vmem>>, vector<1x1x1x8xf32>
    %99 = vector.shape_cast %98 : vector<1x1x1x8xf32> to vector<1x8xf32>
    %100 = vector.broadcast %99 : vector<1x8xf32> to vector<8x8xf32>
    %101 = arith.addf %97, %100 : vector<8x8xf32>
    %cst_88 = arith.constant 0.353553385 : f32
    %102 = vector.broadcast %cst_88 : f32 to vector<8x8xf32>
    %103 = arith.mulf %101, %102 : vector<8x8xf32>
    %c0_89 = arith.constant 0 : index
    %c3_90 = arith.constant 3 : index
    %c0_91 = arith.constant 0 : index
    %c0_92 = arith.constant 0 : index
    %104 = vector.load %arg10[%c0_89, %c3_90, %c0_91, %c0_92] : memref<2x4x8x8xf32, #tpu.memory_space<vmem>>, vector<1x1x8x8xf32>
    %105 = vector.shape_cast %104 : vector<1x1x8x8xf32> to vector<8x8xf32>
    %c1_93 = arith.constant 1 : index
    %c3_94 = arith.constant 3 : index
    %c0_95 = arith.constant 0 : index
    %c0_96 = arith.constant 0 : index
    %106 = vector.load %arg10[%c1_93, %c3_94, %c0_95, %c0_96] : memref<2x4x8x8xf32, #tpu.memory_space<vmem>>, vector<1x1x8x8xf32>
    %107 = vector.shape_cast %106 : vector<1x1x8x8xf32> to vector<8x8xf32>
    %cst_97 = arith.constant dense<0.000000e+00> : vector<8x8xf32>
    %108 = tpu.matmul %103, %105, %cst_97 {dimension_numbers = #tpu.dot_dimension_numbers<[1], [1], [0], [0], [0, 0, 1, 0], [], []>} : vector<8x8xf32>, vector<8x8xf32>, vector<8x8xf32> -> vector<8x8xf32>
    %cst_98 = arith.constant dense<0xFF800000> : vector<8xf32>
    %109 = vector.multi_reduction <maximumf>, %108, %cst_98 [1] : vector<8x8xf32> to vector<8xf32>
    %110 = vector.shape_cast %109 : vector<8xf32> to vector<8x1xf32>
    %111 = vector.broadcast %110 : vector<8x1xf32> to vector<8x8xf32>
    %112 = arith.subf %108, %111 : vector<8x8xf32>
    %113 = math.exp %112 : vector<8x8xf32>
    %cst_99 = arith.constant dense<0.000000e+00> : vector<8xf32>
    %114 = vector.multi_reduction <add>, %113, %cst_99 [1] : vector<8x8xf32> to vector<8xf32>
    %115 = vector.shape_cast %114 : vector<8xf32> to vector<8x1xf32>
    %116 = tpu.reciprocal %115 : vector<8x1xf32> -> vector<8x1xf32>
    %cst_100 = arith.constant dense<0.000000e+00> : vector<8x8xf32>
    %117 = tpu.matmul %113, %107, %cst_100 {dimension_numbers = #tpu.dot_dimension_numbers<[1], [0], [0], [1], [0, 0, 1, 1], [], []>} : vector<8x8xf32>, vector<8x8xf32>, vector<8x8xf32> -> vector<8x8xf32>
    %118 = vector.broadcast %116 : vector<8x1xf32> to vector<8x8xf32>
    %119 = arith.mulf %117, %118 : vector<8x8xf32>
    %c3_101 = arith.constant 3 : index
    %c0_102 = arith.constant 0 : index
    %c0_103 = arith.constant 0 : index
    %120 = vector.load %arg7[%c3_101, %c0_102, %c0_103] : memref<4x8x32xf32, #tpu.memory_space<vmem>>, vector<1x8x32xf32>
    %121 = vector.shape_cast %120 : vector<1x8x32xf32> to vector<8x32xf32>
    %cst_104 = arith.constant dense<0.000000e+00> : vector<8x32xf32>
    %122 = tpu.matmul %119, %121, %cst_104 {dimension_numbers = #tpu.dot_dimension_numbers<[1], [0], [0], [1], [0, 0, 1, 1], [], []>} : vector<8x8xf32>, vector<8x32xf32>, vector<8x32xf32> -> vector<8x32xf32>
    %123 = arith.addf %94, %122 : vector<8x32xf32>
    %c0_105 = arith.constant 0 : index
    %c0_106 = arith.constant 0 : index
    %c0_107 = arith.constant 0 : index
    %124 = vector.load %arg9[%c0_105, %c0_106, %c0_107] : memref<1x8x32xf32, #tpu.memory_space<vmem>>, vector<1x8x32xf32>
    %125 = vector.shape_cast %124 : vector<1x8x32xf32> to vector<8x32xf32>
    %126 = vector.shape_cast %123 : vector<8x32xf32> to vector<1x8x32xf32>
    tpu.vector_store %arg9[%c0_105, %c0_106, %c0_107], %126 {strides = array<i32>} : memref<1x8x32xf32, #tpu.memory_space<vmem>>, vector<1x8x32xf32>,
    return
  }
  func.func @transform_0(%arg0: i32, %arg1: i32) -> (i32, i32, i32) {
    %c0_i32 = arith.constant 0 : i32
    %c0_i32_0 = arith.constant 0 : i32
    return %arg0, %arg1, %c0_i32 : i32, i32, i32
  }
  func.func @transform_1(%arg0: i32, %arg1: i32) -> (i32, i32, i32) {
    %c0_i32 = arith.constant 0 : i32
    %c0_i32_0 = arith.constant 0 : i32
    %c0_i32_1 = arith.constant 0 : i32
    return %arg0, %c0_i32, %c0_i32_0 : i32, i32, i32
  }
  func.func @transform_2(%arg0: i32, %arg1: i32) -> (i32, i32, i32) {
    %c0_i32 = arith.constant 0 : i32
    %c0_i32_0 = arith.constant 0 : i32
    %c0_i32_1 = arith.constant 0 : i32
    return %arg0, %c0_i32, %c0_i32_0 : i32, i32, i32
  }
  func.func @transform_3(%arg0: i32, %arg1: i32) -> (i32, i32, i32, i32) {
    %c0_i32 = arith.constant 0 : i32
    %c0_i32_0 = arith.constant 0 : i32
    %c0_i32_1 = arith.constant 0 : i32
    %c0_i32_2 = arith.constant 0 : i32
    %c0_i32_3 = arith.constant 0 : i32
    return %c0_i32, %c0_i32_0, %c0_i32_1, %c0_i32_2 : i32, i32, i32, i32
  }
  func.func @transform_4(%arg0: i32, %arg1: i32) -> (i32, i32, i32, i32) {
    %c0_i32 = arith.constant 0 : i32
    %c0_i32_0 = arith.constant 0 : i32
    %c0_i32_1 = arith.constant 0 : i32
    %c0_i32_2 = arith.constant 0 : i32
    %c0_i32_3 = arith.constant 0 : i32
    return %c0_i32, %c0_i32_0, %c0_i32_1, %c0_i32_2 : i32, i32, i32, i32
  }
  func.func @transform_5(%arg0: i32, %arg1: i32) -> (i32, i32, i32) {
    %c0_i32 = arith.constant 0 : i32
    %c0_i32_0 = arith.constant 0 : i32
    %c0_i32_1 = arith.constant 0 : i32
    %c0_i32_2 = arith.constant 0 : i32
    return %c0_i32, %c0_i32_0, %c0_i32_1 : i32, i32, i32
  }
  func.func @transform_6(%arg0: i32, %arg1: i32) -> (i32, i32) {
    %c0_i32 = arith.constant 0 : i32
    %c0_i32_0 = arith.constant 0 : i32
    %c0_i32_1 = arith.constant 0 : i32
    return %c0_i32, %c0_i32_0 : i32, i32
  }
  func.func @transform_7(%arg0: i32, %arg1: i32) -> (i32, i32, i32) {
    %c0_i32 = arith.constant 0 : i32
    %c0_i32_0 = arith.constant 0 : i32
    return %arg0, %arg1, %c0_i32 : i32, i32, i32
  }
}

</mosaic_0001>

<llo_original>
// kernel: tpu_custom_call.1
$region0: #{tpu_custom_call.1}
  #allocation0 [shape = 'u32[]', space=smem, size = 0x4, offset = 0x4, fixed_abs, tag = 'smem constant byte address 0x4 - core index']
  #allocation1 [shape = 'u32[72,128]{1,0:T(1,128)}', space=vmem, size = 0x9000, scoped, tag = 'internal scratch']
  #allocation2 [shape = 'f32[2,4,8,8]{3,2,1,0:T(8,128)}', space=vmem, size = 0x8000, scoped, tag = 'scratch operand']
  %s0 = inlined_call_operand.vmem [shape: f32[2,8,32], index: 0, kind: input, shape index: {}]
  %s1 = inlined_call_operand.vmem [shape: f32[2,8,32], index: 1, kind: input, shape index: {}]
  %s2 = inlined_call_operand.vmem [shape: f32[2,8,32], index: 2, kind: input, shape index: {}]
  %s3 = inlined_call_operand.vmem [shape: f32[3,4,32,8], index: 3, kind: input, shape index: {}]
  %s4 = inlined_call_operand.vmem [shape: f32[3,4,1,8], index: 4, kind: input, shape index: {}]
  %s5 = inlined_call_operand.vmem [shape: f32[4,8,32], index: 5, kind: input, shape index: {}]
  %s6 = inlined_call_operand.vmem [shape: f32[1,32], index: 6, kind: input, shape index: {}]
  %s7 = inlined_call_operand.hbm [shape: f32[2,8,32], index: 7, kind: output, shape index: {}]
  %s8 = sld [smem:[#allocation0]]
  $region65: #{tpu_custom_call.1} parent=0
    _
  %s10 = ssub.s32 1, %s8
  %s11 = scalar_select 0, %s10, %s8
  $region1: #{tpu_custom_call.1} parent=0
    #allocation3 [shape = 'u8[8192]{0}', space=vmem, size = 0x2000, scoped, tag = 'output window, operand 0']
    #allocation4 [shape = 's32[2]{0}', space=sflag, size = 0x8, scoped, tag = 'scoped memory for tpu_custom_call.1']
    %12 = vsyncpa [#allocation4], 0
    %s13 = scalar_lea.sflag [#allocation4], 1
    %14 = vsyncpa %s13, 0
    loop: start=0, step=1, limit=4
    $region2: #{tpu_custom_call.1} parent=1 // loop_pre_header
      _
    $region3: #{tpu_custom_call.1} parent=1 // loop_header
      %s16 = sphi 0, %s20
      %p17 = scmp.ge.s32.totalorder %s16, 4
      %s23 = sphi 0, %s35
      %s24 = sphi 0, %s31
      %s25 = sphi 0, %s23
      %s26 = sphi 0, %s24
      %s27 = sphi 0, %s25
      %s28 = sphi 0, %s26
      %s40 = sphi 0, %s42
      %s43 = sphi 0, %s40
      %s44 = sphi 0, %s43
      %s60 = sphi 0, %s44
      %s66 = sphi 0, %s68
      %s69 = sphi 0, %s66
      %s70 = sphi 0, %s69
      %s86 = sphi 0, %s70
      %s92 = sphi 0, %s94
      %s95 = sphi 0, %s92
      %s96 = sphi 0, %s95
      %s112 = sphi 0, %s96
      %s116 = sphi 0, %s116
      %s118 = sphi 0, %s116
      %s119 = sphi 0, %s118
      %s133 = sphi 0, %s119
      %s137 = sphi 0, %s137
      %s139 = sphi 0, %s137
      %s140 = sphi 0, %s139
      %s154 = sphi 0, %s140
      %s158 = sphi 0, %s158
      %s160 = sphi 0, %s158
      %s161 = sphi 0, %s160
      %s175 = sphi 0, %s161
      %s179 = sphi 0, %s179
      %s181 = sphi 0, %s179
      %s182 = sphi 0, %s181
      %s196 = sphi 0, %s182
      %s204 = sphi 0, %s206
      %s207 = sphi 0, %s204
      %s208 = sphi 0, %s207
      %s224 = sphi 0, %s208
    $region4: #{tpu_custom_call.1} parent=1 // loop_header_branch
      %19 = sbr.rel (%p17) target = $region8
    $region5: #{tpu_custom_call.1} parent=1 // loop_body
      %s21 = ssub.s32 %s16, 1
      %s22 = ssub.s32 %s16, 2
      %s29 = sadd.s32 1, %s24
      %p30 = scmp.ge.s32.totalorder %s29, 1
      %s31 = scalar_select %p30, 0, %s29
      %s32 = sadd.s32 1, %s23
      %s33 = scalar_select %p30, %s32, %s23
      %p34 = scmp.ge.s32.totalorder %s33, 2
      %s35 = scalar_select %p34, 0, %s33
      %s36 = ssub.s32 %s23, %s35
      %s37 = ssub.s32 %s24, %s31
      %s38 = sor.u32 %s36, %s37
      %p39 = scmp.eq.s32.totalorder %s38, 0
      %s41 = sadd.s32 %s40, 1
      %s42 = scalar_select %p39, %s40, %s41
      %p45 = pneg %p39
      %p46 = scmp.eq.s32.totalorder %s16, 1
      %p47 = por %p45, %p46
      %p48 = scmp.ne.s32.totalorder %s40, %s43
      %p49 = scmp.eq.s32.totalorder %s16, 0
      %p50 = por %p48, %p49
      %p51 = scmp.ne.s32.totalorder %s40, %s43
      %p52 = scmp.eq.s32.totalorder %s21, 1
      %p53 = por %p51, %p52
      %p54 = scmp.ne.s32.totalorder %s43, %s44
      %p55 = scmp.eq.s32.totalorder %s21, 0
      %p56 = por %p54, %p55
      %p57 = scmp.ne.s32.totalorder %s43, %s44
      %p58 = scmp.eq.s32.totalorder %s22, 1
      %p59 = por %p57, %p58
      %p61 = scmp.ne.s32.totalorder %s44, %s60
      %p62 = scmp.eq.s32.totalorder %s22, 0
      %p63 = por %p61, %p62
      %s64 = ssub.s32 %s23, %s35
      %p65 = scmp.eq.s32.totalorder %s64, 0
      %s67 = sadd.s32 %s66, 1
      %s68 = scalar_select %p65, %s66, %s67
      %p71 = pneg %p65
      %p72 = scmp.eq.s32.totalorder %s16, 1
      %p73 = por %p71, %p72
      %p74 = scmp.ne.s32.totalorder %s66, %s69
      %p75 = scmp.eq.s32.totalorder %s16, 0
      %p76 = por %p74, %p75
      %p77 = scmp.ne.s32.totalorder %s66, %s69
      %p78 = scmp.eq.s32.totalorder %s21, 1
      %p79 = por %p77, %p78
      %p80 = scmp.ne.s32.totalorder %s69, %s70
      %p81 = scmp.eq.s32.totalorder %s21, 0
      %p82 = por %p80, %p81
      %p83 = scmp.ne.s32.totalorder %s69, %s70
      %p84 = scmp.eq.s32.totalorder %s22, 1
      %p85 = por %p83, %p84
      %p87 = scmp.ne.s32.totalorder %s70, %s86
      %p88 = scmp.eq.s32.totalorder %s22, 0
      %p89 = por %p87, %p88
      %s90 = ssub.s32 %s23, %s35
      %p91 = scmp.eq.s32.totalorder %s90, 0
      %s93 = sadd.s32 %s92, 1
      %s94 = scalar_select %p91, %s92, %s93
      %p97 = pneg %p91
      %p98 = scmp.eq.s32.totalorder %s16, 1
      %p99 = por %p97, %p98
      %p100 = scmp.ne.s32.totalorder %s92, %s95
      %p101 = scmp.eq.s32.totalorder %s16, 0
      %p102 = por %p100, %p101
      %p103 = scmp.ne.s32.totalorder %s92, %s95
      %p104 = scmp.eq.s32.totalorder %s21, 1
      %p105 = por %p103, %p104
      %p106 = scmp.ne.s32.totalorder %s95, %s96
      %p107 = scmp.eq.s32.totalorder %s21, 0
      %p108 = por %p106, %p107
      %p109 = scmp.ne.s32.totalorder %s95, %s96
      %p110 = scmp.eq.s32.totalorder %s22, 1
      %p111 = por %p109, %p110
      %p113 = scmp.ne.s32.totalorder %s96, %s112
      %p114 = scmp.eq.s32.totalorder %s22, 0
      %p115 = por %p113, %p114
      %s117 = sadd.s32 %s116, 1
      %p120 = scmp.eq.s32.totalorder %s16, 1
      %p121 = scmp.ne.s32.totalorder %s116, %s118
      %p122 = scmp.eq.s32.totalorder %s16, 0
      %p123 = por %p121, %p122
      %p124 = scmp.ne.s32.totalorder %s116, %s118
      %p125 = scmp.eq.s32.totalorder %s21, 1
      %p126 = por %p124, %p125
      %p127 = scmp.ne.s32.totalorder %s118, %s119
      %p128 = scmp.eq.s32.totalorder %s21, 0
      %p129 = por %p127, %p128
      %p130 = scmp.ne.s32.totalorder %s118, %s119
      %p131 = scmp.eq.s32.totalorder %s22, 1
      %p132 = por %p130, %p131
      %p134 = scmp.ne.s32.totalorder %s119, %s133
      %p135 = scmp.eq.s32.totalorder %s22, 0
      %p136 = por %p134, %p135
      %s138 = sadd.s32 %s137, 1
      %p141 = scmp.eq.s32.totalorder %s16, 1
      %p142 = scmp.ne.s32.totalorder %s137, %s139
      %p143 = scmp.eq.s32.totalorder %s16, 0
      %p144 = por %p142, %p143
      %p145 = scmp.ne.s32.totalorder %s137, %s139
      %p146 = scmp.eq.s32.totalorder %s21, 1
      %p147 = por %p145, %p146
      %p148 = scmp.ne.s32.totalorder %s139, %s140
      %p149 = scmp.eq.s32.totalorder %s21, 0
      %p150 = por %p148, %p149
      %p151 = scmp.ne.s32.totalorder %s139, %s140
      %p152 = scmp.eq.s32.totalorder %s22, 1
      %p153 = por %p151, %p152
      %p155 = scmp.ne.s32.totalorder %s140, %s154
      %p156 = scmp.eq.s32.totalorder %s22, 0
      %p157 = por %p155, %p156
      %s159 = sadd.s32 %s158, 1
      %p162 = scmp.eq.s32.totalorder %s16, 1
      %p163 = scmp.ne.s32.totalorder %s158, %s160
      %p164 = scmp.eq.s32.totalorder %s16, 0
      %p165 = por %p163, %p164
      %p166 = scmp.ne.s32.totalorder %s158, %s160
      %p167 = scmp.eq.s32.totalorder %s21, 1
      %p168 = por %p166, %p167
      %p169 = scmp.ne.s32.totalorder %s160, %s161
      %p170 = scmp.eq.s32.totalorder %s21, 0
      %p171 = por %p169, %p170
      %p172 = scmp.ne.s32.totalorder %s160, %s161
      %p173 = scmp.eq.s32.totalorder %s22, 1
      %p174 = por %p172, %p173
      %p176 = scmp.ne.s32.totalorder %s161, %s175
      %p177 = scmp.eq.s32.totalorder %s22, 0
      %p178 = por %p176, %p177
      %s180 = sadd.s32 %s179, 1
      %p183 = scmp.eq.s32.totalorder %s16, 1
      %p184 = scmp.ne.s32.totalorder %s179, %s181
      %p185 = scmp.eq.s32.totalorder %s16, 0
      %p186 = por %p184, %p185
      %p187 = scmp.ne.s32.totalorder %s179, %s181
      %p188 = scmp.eq.s32.totalorder %s21, 1
      %p189 = por %p187, %p188
      %p190 = scmp.ne.s32.totalorder %s181, %s182
      %p191 = scmp.eq.s32.totalorder %s21, 0
      %p192 = por %p190, %p191
      %p193 = scmp.ne.s32.totalorder %s181, %s182
      %p194 = scmp.eq.s32.totalorder %s22, 1
      %p195 = por %p193, %p194
      %p197 = scmp.ne.s32.totalorder %s182, %s196
      %p198 = scmp.eq.s32.totalorder %s22, 0
      %p199 = por %p197, %p198
      %s200 = ssub.s32 %s23, %s35
      %s201 = ssub.s32 %s24, %s31
      %s202 = sor.u32 %s200, %s201
      %p203 = scmp.eq.s32.totalorder %s202, 0
      %s205 = sadd.s32 %s204, 1
      %s206 = scalar_select %p203, %s204, %s205
      %p209 = pneg %p203
      %p210 = scmp.eq.s32.totalorder %s16, 1
      %p211 = por %p209, %p210
      %p212 = scmp.ne.s32.totalorder %s204, %s207
      %p213 = scmp.eq.s32.totalorder %s16, 0
      %p214 = por %p212, %p213
      %p215 = scmp.ne.s32.totalorder %s204, %s207
      %p216 = scmp.eq.s32.totalorder %s21, 1
      %p217 = por %p215, %p216
      %p218 = scmp.ne.s32.totalorder %s207, %s208
      %p219 = scmp.eq.s32.totalorder %s21, 0
      %p220 = por %p218, %p219
      %p221 = scmp.ne.s32.totalorder %s207, %s208
      %p222 = scmp.eq.s32.totalorder %s22, 1
      %p223 = por %p221, %p222
      %p225 = scmp.ne.s32.totalorder %s208, %s224
      %p226 = scmp.eq.s32.totalorder %s22, 0
      %p227 = por %p225, %p226
      %p228 = scmp.le.s32.totalorder 1, %s16
      %p229 = scmp.lt.s32.totalorder %s16, 3
      %p230 = pnand %p228, %p229
      %p231 = pneg %p230
      // Predicated region
      $region9: #{tpu_custom_call.1} parent=5 // pred_check
        _
      $region10: #{tpu_custom_call.1} parent=5 // pred_check_branch
        %233 = sbr.rel (%p230) target = $region12
      $region11: #{tpu_custom_call.1} parent=5 // pred_region
        %s234 = ssub.s32 %s16, 1
        // Predicated region
        $region13: #{tpu_custom_call.1} parent=11 // pred_check
          %p235 = pneg %p129
        $region14: #{tpu_custom_call.1} parent=11 // pred_check_branch
          %237 = sbr.rel (%p235) target = $region16
        $region15: #{tpu_custom_call.1} parent=11 // pred_region
          _
        $region16: #{tpu_custom_call.1} parent=11 // pred_fallthru
          _
        // Predicated region
        $region17: #{tpu_custom_call.1} parent=11 // pred_check
          %p238 = pneg %p150
        $region18: #{tpu_custom_call.1} parent=11 // pred_check_branch
          %240 = sbr.rel (%p238) target = $region20
        $region19: #{tpu_custom_call.1} parent=11 // pred_region
          _
        $region20: #{tpu_custom_call.1} parent=11 // pred_fallthru
          _
        // Predicated region
        $region21: #{tpu_custom_call.1} parent=11 // pred_check
          %p241 = pneg %p171
        $region22: #{tpu_custom_call.1} parent=11 // pred_check_branch
          %243 = sbr.rel (%p241) target = $region24
        $region23: #{tpu_custom_call.1} parent=11 // pred_region
          _
        $region24: #{tpu_custom_call.1} parent=11 // pred_fallthru
          _
        // Predicated region
        $region25: #{tpu_custom_call.1} parent=11 // pred_check
          %p244 = pneg %p192
        $region26: #{tpu_custom_call.1} parent=11 // pred_check_branch
          %246 = sbr.rel (%p244) target = $region28
        $region27: #{tpu_custom_call.1} parent=11 // pred_region
          _
        $region28: #{tpu_custom_call.1} parent=11 // pred_fallthru
          _
      $region12: #{tpu_custom_call.1} parent=5 // pred_fallthru
        _
      %p247 = scmp.lt.s32.totalorder %s16, 2
      // Predicated region
      $region29: #{tpu_custom_call.1} parent=5 // pred_check
        %p248 = pneg %p247
      $region30: #{tpu_custom_call.1} parent=5 // pred_check_branch
        %250 = sbr.rel (%p248) target = $region32
      $region31: #{tpu_custom_call.1} parent=5 // pred_region
        // Predicated region
        $region33: #{tpu_custom_call.1} parent=31 // pred_check
          %p251 = pneg %p50
        $region34: #{tpu_custom_call.1} parent=31 // pred_check_branch
          %253 = sbr.rel (%p251) target = $region36
        $region35: #{tpu_custom_call.1} parent=31 // pred_region
          %p254 = scmp.lt.s32.totalorder %s23, 1
          %s255 = scalar_select %p254, %s23, 1
          %p256 = scmp.lt.s32.totalorder %s24, 0
          %s257 = scalar_select %p256, %s24, 0
          %s258 = sadd.s32 %s257, %s255
          %s259 = smul.addr %s258, 8
          %s260 = scalar_lea.vmem %s0, %s259
        $region36: #{tpu_custom_call.1} parent=31 // pred_fallthru
          _
        // Predicated region
        $region37: #{tpu_custom_call.1} parent=31 // pred_check
          %p261 = pneg %p76
        $region38: #{tpu_custom_call.1} parent=31 // pred_check_branch
          %263 = sbr.rel (%p261) target = $region40
        $region39: #{tpu_custom_call.1} parent=31 // pred_region
          %p264 = scmp.lt.s32.totalorder %s23, 1
          %s265 = scalar_select %p264, %s23, 1
          %s266 = smul.addr %s265, 8
          %s267 = scalar_lea.vmem %s1, %s266
        $region40: #{tpu_custom_call.1} parent=31 // pred_fallthru
          _
        // Predicated region
        $region41: #{tpu_custom_call.1} parent=31 // pred_check
          %p268 = pneg %p102
        $region42: #{tpu_custom_call.1} parent=31 // pred_check_branch
          %270 = sbr.rel (%p268) target = $region44
        $region43: #{tpu_custom_call.1} parent=31 // pred_region
          %p271 = scmp.lt.s32.totalorder %s23, 1
          %s272 = scalar_select %p271, %s23, 1
          %s273 = smul.addr %s272, 8
          %s274 = scalar_lea.vmem %s2, %s273
        $region44: #{tpu_custom_call.1} parent=31 // pred_fallthru
          _
      $region32: #{tpu_custom_call.1} parent=5 // pred_fallthru
        _
      %p275 = scmp.le.s32.totalorder 1, %s16
      %p276 = scmp.lt.s32.totalorder %s16, 3
      %p277 = pnand %p275, %p276
      %p278 = pneg %p277
      // Predicated region
      $region45: #{tpu_custom_call.1} parent=5 // pred_check
        _
      $region46: #{tpu_custom_call.1} parent=5 // pred_check_branch
        %280 = sbr.rel (%p277) target = $region48
      $region47: #{tpu_custom_call.1} parent=5 // pred_region
        %s281 = ssub.s32 %s16, 1
        %p282 = scmp.lt.s32.totalorder %s25, 1
        %s283 = scalar_select %p282, %s25, 1
        %p284 = scmp.lt.s32.totalorder %s26, 0
        %s285 = scalar_select %p284, %s26, 0
        %s286 = sadd.s32 %s285, %s283
        %s287 = smul.addr %s286, 8
        %s288 = scalar_lea.vmem %s0, %s287
        %p289 = pneg %p56
        %p290 = pneg %p53
        %p291 = scmp.lt.s32.totalorder %s25, 1
        %s292 = scalar_select %p291, %s25, 1
        %s293 = smul.addr %s292, 8
        %s294 = scalar_lea.vmem %s1, %s293
        %p295 = pneg %p82
        %p296 = pneg %p79
        %p297 = scmp.lt.s32.totalorder %s25, 1
        %s298 = scalar_select %p297, %s25, 1
        %s299 = smul.addr %s298, 8
        %s300 = scalar_lea.vmem %s2, %s299
        %p301 = pneg %p108
        %p302 = pneg %p105
        %p303 = pneg %p129
        %p304 = pneg %p126
        %p305 = pneg %p150
        %p306 = pneg %p147
        %p307 = pneg %p171
        %p308 = pneg %p168
        %p309 = pneg %p192
        %p310 = pneg %p189
        %p311 = pneg %p220
        %p312 = pneg %p217
        %s313 = sand.u32 %s207, 1
        %s314 = scalar_lea.sflag [#allocation4], %s313
        %s315 = sand.u32 %s207, 1
        %s316 = smul.addr %s315, 8
        %s317 = scalar_lea.vmem [#allocation3], %s316
        %p318 = scmp.lt.s32.totalorder %s25, 1
        %s319 = scalar_select %p318, %s25, 1
        %p320 = scmp.lt.s32.totalorder %s26, 0
        %s321 = scalar_select %p320, %s26, 0
        %s322 = sadd.s32 %s321, %s319
        %s323 = smul.addr %s322, 8
        %s324 = scalar_lea.vmem %s0, %s323
        %p325 = scmp.lt.s32.totalorder %s25, 1
        %s326 = scalar_select %p325, %s25, 1
        %s327 = smul.addr %s326, 8
        %s328 = scalar_lea.vmem %s1, %s327
        %p329 = scmp.lt.s32.totalorder %s25, 1
        %s330 = scalar_select %p329, %s25, 1
        %s331 = smul.addr %s330, 8
        %s332 = scalar_lea.vmem %s2, %s331
        %p333 = scmp.eq.s32.totalorder %s26, 0
        // Predicated region
        $region49: #{tpu_custom_call.1} parent=47 // pred_check
          %p334 = pneg %p333
        $region50: #{tpu_custom_call.1} parent=47 // pred_check_branch
          %336 = sbr.rel (%p334) target = $region52
        $region51: #{tpu_custom_call.1} parent=47 // pred_region
          %v337 = vld [vmem:[%s328] sm:$0xff]
          %v338 = vld [vmem:[%s332] sm:$0xff]
          %s339 = scalar_lea.vmem %s3, 128
          %v340 = vld [vmem:[%s339] sm:$0xff]
          %v341 = vld [vmem:[%s339 + $0x8] sm:$0xff]
          %v342 = vld [vmem:[%s339 + $0x10] sm:$0xff]
          %v343 = vld [vmem:[%s339 + $0x18] sm:$0xff]
          %s344 = scalar_lea.vmem %s4, 4
          %v345 = vld [vmem:[%s344] sm:$0x1]
          %v347 = vperm.slane %v345, 0
          %vm349 = vcmask 261120
          %v351 = vsel %vm349, %v337, 0
          %353 = vmatpush.msra.mxu0 0.0
          %354 = vmatpush.msra.mxu0 0.0
          %355 = vmatpush.msra.mxu0 0.0
          %356 = vmatpush.msra.mxu0 0.0
          %357 = vmatpush.msra.mxu0 0.0
          %358 = vmatpush.msra.mxu0 0.0
          %359 = vmatpush.msra.mxu0 0.0
          %360 = vmatpush.msra.mxu0 0.0
          %361 = vmatpush.msra.mxu0 0.0
          %362 = vmatpush.msra.mxu0 0.0
          %363 = vmatpush.msra.mxu0 0.0
          %364 = vmatpush.msra.mxu0 0.0
          %365 = vmatpush.msra.mxu0 %v343
          %366 = vmatpush.msra.mxu0 %v342
          %367 = vmatpush.msra.mxu0 %v341
          %368 = vmatpush.msra.mxu0 %v340
          %369 = vmatmul.f32.gmra.mxu0 %v351
          %v370 = vpop.f32.mrf.mxu0
          %v371 = vadd.f32 %v347, %v370
          %372 = vdwg.mxu0
          %vm373 = vcmask 64512
          %374 = vst.msk [vmem:[#allocation2] sm:$0xff] %vm373, %v371
          %s375 = scalar_lea.vmem %s3, 256
          %v376 = vld [vmem:[%s375] sm:$0xff]
          %v377 = vld [vmem:[%s375 + $0x8] sm:$0xff]
          %v378 = vld [vmem:[%s375 + $0x10] sm:$0xff]
          %v379 = vld [vmem:[%s375 + $0x18] sm:$0xff]
          %s380 = scalar_lea.vmem %s4, 8
          %v381 = vld [vmem:[%s380] sm:$0x1]
          %v383 = vperm.slane %v381, 0
          %v386 = vsel %vm349, %v338, 0
          %388 = vmatpush.msra.mxu0 0.0
          %389 = vmatpush.msra.mxu0 0.0
          %390 = vmatpush.msra.mxu0 0.0
          %391 = vmatpush.msra.mxu0 0.0
          %392 = vmatpush.msra.mxu0 0.0
          %393 = vmatpush.msra.mxu0 0.0
          %394 = vmatpush.msra.mxu0 0.0
          %395 = vmatpush.msra.mxu0 0.0
          %396 = vmatpush.msra.mxu0 0.0
          %397 = vmatpush.msra.mxu0 0.0
          %398 = vmatpush.msra.mxu0 0.0
          %399 = vmatpush.msra.mxu0 0.0
          %400 = vmatpush.msra.mxu0 %v379
          %401 = vmatpush.msra.mxu0 %v378
          %402 = vmatpush.msra.mxu0 %v377
          %403 = vmatpush.msra.mxu0 %v376
          %404 = vmatmul.f32.gmra.mxu0 %v386
          %v405 = vpop.f32.mrf.mxu0
          %v406 = vadd.f32 %v383, %v405
          %407 = vdwg.mxu0
          %s408 = scalar_lea.vmem [#allocation2], 32
          %409 = vst.msk [vmem:[%s408] sm:$0xff] %vm373, %v406
          %s410 = scalar_lea.vmem %s3, 160
          %v411 = vld [vmem:[%s410] sm:$0xff]
          %v412 = vld [vmem:[%s410 + $0x8] sm:$0xff]
          %v413 = vld [vmem:[%s410 + $0x10] sm:$0xff]
          %v414 = vld [vmem:[%s410 + $0x18] sm:$0xff]
          %s415 = scalar_lea.vmem %s4, 5
          %v416 = vld [vmem:[%s415] sm:$0x1]
          %v418 = vperm.slane %v416, 0
          %420 = vmatpush.msra.mxu0 0.0
          %421 = vmatpush.msra.mxu0 0.0
          %422 = vmatpush.msra.mxu0 0.0
          %423 = vmatpush.msra.mxu0 0.0
          %424 = vmatpush.msra.mxu0 0.0
          %425 = vmatpush.msra.mxu0 0.0
          %426 = vmatpush.msra.mxu0 0.0
          %427 = vmatpush.msra.mxu0 0.0
          %428 = vmatpush.msra.mxu0 0.0
          %429 = vmatpush.msra.mxu0 0.0
          %430 = vmatpush.msra.mxu0 0.0
          %431 = vmatpush.msra.mxu0 0.0
          %432 = vmatpush.msra.mxu0 %v414
          %433 = vmatpush.msra.mxu0 %v413
          %434 = vmatpush.msra.mxu0 %v412
          %435 = vmatpush.msra.mxu0 %v411
          %436 = vmatmul.f32.gmra.mxu0 %v351
          %v437 = vpop.f32.mrf.mxu0
          %v438 = vadd.f32 %v418, %v437
          %439 = vdwg.mxu0
          %s440 = scalar_lea.vmem [#allocation2], 8
          %441 = vst.msk [vmem:[%s440] sm:$0xff] %vm373, %v438
          %s442 = scalar_lea.vmem %s3, 288
          %v443 = vld [vmem:[%s442] sm:$0xff]
          %v444 = vld [vmem:[%s442 + $0x8] sm:$0xff]
          %v445 = vld [vmem:[%s442 + $0x10] sm:$0xff]
          %v446 = vld [vmem:[%s442 + $0x18] sm:$0xff]
          %s447 = scalar_lea.vmem %s4, 9
          %v448 = vld [vmem:[%s447] sm:$0x1]
          %v450 = vperm.slane %v448, 0
          %452 = vmatpush.msra.mxu0 0.0
          %453 = vmatpush.msra.mxu0 0.0
          %454 = vmatpush.msra.mxu0 0.0
          %455 = vmatpush.msra.mxu0 0.0
          %456 = vmatpush.msra.mxu0 0.0
          %457 = vmatpush.msra.mxu0 0.0
          %458 = vmatpush.msra.mxu0 0.0
          %459 = vmatpush.msra.mxu0 0.0
          %460 = vmatpush.msra.mxu0 0.0
          %461 = vmatpush.msra.mxu0 0.0
          %462 = vmatpush.msra.mxu0 0.0
          %463 = vmatpush.msra.mxu0 0.0
          %464 = vmatpush.msra.mxu0 %v446
          %465 = vmatpush.msra.mxu0 %v445
          %466 = vmatpush.msra.mxu0 %v444
          %467 = vmatpush.msra.mxu0 %v443
          %468 = vmatmul.f32.gmra.mxu0 %v386
          %v469 = vpop.f32.mrf.mxu0
          %v470 = vadd.f32 %v450, %v469
          %471 = vdwg.mxu0
          %s472 = scalar_lea.vmem [#allocation2], 40
          %473 = vst.msk [vmem:[%s472] sm:$0xff] %vm373, %v470
          %s474 = scalar_lea.vmem %s3, 192
          %v475 = vld [vmem:[%s474] sm:$0xff]
          %v476 = vld [vmem:[%s474 + $0x8] sm:$0xff]
          %v477 = vld [vmem:[%s474 + $0x10] sm:$0xff]
          %v478 = vld [vmem:[%s474 + $0x18] sm:$0xff]
          %s479 = scalar_lea.vmem %s4, 6
          %v480 = vld [vmem:[%s479] sm:$0x1]
          %v482 = vperm.slane %v480, 0
          %484 = vmatpush.msra.mxu0 0.0
          %485 = vmatpush.msra.mxu0 0.0
          %486 = vmatpush.msra.mxu0 0.0
          %487 = vmatpush.msra.mxu0 0.0
          %488 = vmatpush.msra.mxu0 0.0
          %489 = vmatpush.msra.mxu0 0.0
          %490 = vmatpush.msra.mxu0 0.0
          %491 = vmatpush.msra.mxu0 0.0
          %492 = vmatpush.msra.mxu0 0.0
          %493 = vmatpush.msra.mxu0 0.0
          %494 = vmatpush.msra.mxu0 0.0
          %495 = vmatpush.msra.mxu0 0.0
          %496 = vmatpush.msra.mxu0 %v478
          %497 = vmatpush.msra.mxu0 %v477
          %498 = vmatpush.msra.mxu0 %v476
          %499 = vmatpush.msra.mxu0 %v475
          %500 = vmatmul.f32.gmra.mxu0 %v351
          %v501 = vpop.f32.mrf.mxu0
          %v502 = vadd.f32 %v482, %v501
          %503 = vdwg.mxu0
          %s504 = scalar_lea.vmem [#allocation2], 16
          %505 = vst.msk [vmem:[%s504] sm:$0xff] %vm373, %v502
          %s506 = scalar_lea.vmem %s3, 320
          %v507 = vld [vmem:[%s506] sm:$0xff]
          %v508 = vld [vmem:[%s506 + $0x8] sm:$0xff]
          %v509 = vld [vmem:[%s506 + $0x10] sm:$0xff]
          %v510 = vld [vmem:[%s506 + $0x18] sm:$0xff]
          %s511 = scalar_lea.vmem %s4, 10
          %v512 = vld [vmem:[%s511] sm:$0x1]
          %v514 = vperm.slane %v512, 0
          %516 = vmatpush.msra.mxu0 0.0
          %517 = vmatpush.msra.mxu0 0.0
          %518 = vmatpush.msra.mxu0 0.0
          %519 = vmatpush.msra.mxu0 0.0
          %520 = vmatpush.msra.mxu0 0.0
          %521 = vmatpush.msra.mxu0 0.0
          %522 = vmatpush.msra.mxu0 0.0
          %523 = vmatpush.msra.mxu0 0.0
          %524 = vmatpush.msra.mxu0 0.0
          %525 = vmatpush.msra.mxu0 0.0
          %526 = vmatpush.msra.mxu0 0.0
          %527 = vmatpush.msra.mxu0 0.0
          %528 = vmatpush.msra.mxu0 %v510
          %529 = vmatpush.msra.mxu0 %v509
          %530 = vmatpush.msra.mxu0 %v508
          %531 = vmatpush.msra.mxu0 %v507
          %532 = vmatmul.f32.gmra.mxu0 %v386
          %v533 = vpop.f32.mrf.mxu0
          %v534 = vadd.f32 %v514, %v533
          %535 = vdwg.mxu0
          %s536 = scalar_lea.vmem [#allocation2], 48
          %537 = vst.msk [vmem:[%s536] sm:$0xff] %vm373, %v534
          %s538 = scalar_lea.vmem %s3, 224
          %v539 = vld [vmem:[%s538] sm:$0xff]
          %v540 = vld [vmem:[%s538 + $0x8] sm:$0xff]
          %v541 = vld [vmem:[%s538 + $0x10] sm:$0xff]
          %v542 = vld [vmem:[%s538 + $0x18] sm:$0xff]
          %s543 = scalar_lea.vmem %s4, 7
          %v544 = vld [vmem:[%s543] sm:$0x1]
          %v546 = vperm.slane %v544, 0
          %548 = vmatpush.msra.mxu0 0.0
          %549 = vmatpush.msra.mxu0 0.0
          %550 = vmatpush.msra.mxu0 0.0
          %551 = vmatpush.msra.mxu0 0.0
          %552 = vmatpush.msra.mxu0 0.0
          %553 = vmatpush.msra.mxu0 0.0
          %554 = vmatpush.msra.mxu0 0.0
          %555 = vmatpush.msra.mxu0 0.0
          %556 = vmatpush.msra.mxu0 0.0
          %557 = vmatpush.msra.mxu0 0.0
          %558 = vmatpush.msra.mxu0 0.0
          %559 = vmatpush.msra.mxu0 0.0
          %560 = vmatpush.msra.mxu0 %v542
          %561 = vmatpush.msra.mxu0 %v541
          %562 = vmatpush.msra.mxu0 %v540
          %563 = vmatpush.msra.mxu0 %v539
          %564 = vmatmul.f32.gmra.mxu0 %v351
          %v565 = vpop.f32.mrf.mxu0
          %v566 = vadd.f32 %v546, %v565
          %567 = vdwg.mxu0
          %s568 = scalar_lea.vmem [#allocation2], 24
          %569 = vst.msk [vmem:[%s568] sm:$0xff] %vm373, %v566
          %s570 = scalar_lea.vmem %s3, 352
          %v571 = vld [vmem:[%s570] sm:$0xff]
          %v572 = vld [vmem:[%s570 + $0x8] sm:$0xff]
          %v573 = vld [vmem:[%s570 + $0x10] sm:$0xff]
          %v574 = vld [vmem:[%s570 + $0x18] sm:$0xff]
          %s575 = scalar_lea.vmem %s4, 11
          %v576 = vld [vmem:[%s575] sm:$0x1]
          %v578 = vperm.slane %v576, 0
          %580 = vmatpush.msra.mxu0 0.0
          %581 = vmatpush.msra.mxu0 0.0
          %582 = vmatpush.msra.mxu0 0.0
          %583 = vmatpush.msra.mxu0 0.0
          %584 = vmatpush.msra.mxu0 0.0
          %585 = vmatpush.msra.mxu0 0.0
          %586 = vmatpush.msra.mxu0 0.0
          %587 = vmatpush.msra.mxu0 0.0
          %588 = vmatpush.msra.mxu0 0.0
          %589 = vmatpush.msra.mxu0 0.0
          %590 = vmatpush.msra.mxu0 0.0
          %591 = vmatpush.msra.mxu0 0.0
          %592 = vmatpush.msra.mxu0 %v574
          %593 = vmatpush.msra.mxu0 %v573
          %594 = vmatpush.msra.mxu0 %v572
          %595 = vmatpush.msra.mxu0 %v571
          %596 = vmatmul.f32.gmra.mxu0 %v386
          %v597 = vpop.f32.mrf.mxu0
          %v598 = vadd.f32 %v578, %v597
          %599 = vdwg.mxu0
          %s600 = scalar_lea.vmem [#allocation2], 56
          %601 = vst.msk [vmem:[%s600] sm:$0xff] %vm373, %v598
        $region52: #{tpu_custom_call.1} parent=47 // pred_fallthru
          _
        %v602 = vld [vmem:[%s324] sm:$0xff]
        %v603 = vld [vmem:[%s6] sm:$0x1]
        %v605 = vperm.slane %v603, 0
        %v607 = vld [vmem:[%s3] sm:$0xff]
        %v608 = vld [vmem:[%s3 + $0x8] sm:$0xff]
        %v609 = vld [vmem:[%s3 + $0x10] sm:$0xff]
        %v610 = vld [vmem:[%s3 + $0x18] sm:$0xff]
        %v611 = vld [vmem:[%s4] sm:$0x1]
        %v613 = vperm.slane %v611, 0
        %vm615 = vcmask 261120
        %v617 = vsel %vm615, %v602, 0
        %619 = vmatpush.msra.mxu0 0.0
        %620 = vmatpush.msra.mxu0 0.0
        %621 = vmatpush.msra.mxu0 0.0
        %622 = vmatpush.msra.mxu0 0.0
        %623 = vmatpush.msra.mxu0 0.0
        %624 = vmatpush.msra.mxu0 0.0
        %625 = vmatpush.msra.mxu0 0.0
        %626 = vmatpush.msra.mxu0 0.0
        %627 = vmatpush.msra.mxu0 0.0
        %628 = vmatpush.msra.mxu0 0.0
        %629 = vmatpush.msra.mxu0 0.0
        %630 = vmatpush.msra.mxu0 0.0
        %631 = vmatpush.msra.mxu0 %v610
        %632 = vmatpush.msra.mxu0 %v609
        %633 = vmatpush.msra.mxu0 %v608
        %634 = vmatpush.msra.mxu0 %v607
        %635 = vmatmul.f32.gmra.mxu0 %v617
        %v636 = vpop.f32.mrf.mxu0
        %v637 = vadd.f32 %v613, %v636
        %638 = vdwg.mxu0
        %v639 = vmul.f32 %v637, 0.35355338
        %v640 = vld [vmem:[#allocation2] sm:$0xff]
        %s641 = scalar_lea.vmem [#allocation2], 32
        %v642 = vld [vmem:[%s641] sm:$0xff]
        %vm643 = vcmask 64512
        %v645 = vsel %vm643, %v639, 0
        %v648 = vsel %vm643, %v640, 0
        %650 = vmatpush.xpose.msra.mxu0 0.0
        %651 = vmatpush.xpose.msra.mxu0 0.0
        %652 = vmatpush.xpose.msra.mxu0 0.0
        %653 = vmatpush.xpose.msra.mxu0 0.0
        %654 = vmatpush.xpose.msra.mxu0 0.0
        %655 = vmatpush.xpose.msra.mxu0 0.0
        %656 = vmatpush.xpose.msra.mxu0 0.0
        %657 = vmatpush.xpose.msra.mxu0 0.0
        %658 = vmatpush.xpose.msra.mxu0 0.0
        %659 = vmatpush.xpose.msra.mxu0 0.0
        %660 = vmatpush.xpose.msra.mxu0 0.0
        %661 = vmatpush.xpose.msra.mxu0 0.0
        %662 = vmatpush.xpose.msra.mxu0 0.0
        %663 = vmatpush.xpose.msra.mxu0 0.0
        %664 = vmatpush.xpose.msra.mxu0 0.0
        %665 = vmatpush.xpose.msra.mxu0 %v648
        %666 = vmatmul.f32.gmra.mxu0 %v645
        %v667 = vpop.f32.mrf.mxu0
        %v668 = vadd.f32 0.0, %v667
        %669 = vdwg.mxu0
        %v670 = vsel %vm643, %v668, -inf
        %671 = vmax.xlane.f32.xlu0 %v670
        %v672 = vpop.xlane.xlu0 %671
        %v673 = vsub.f32 %v668, %v672
        %v674 = vmul.f32 %v673, 1.442695
        %v675 = vpow.pop %v674
        %v676 = vsel %vm643, %v675, 0.0
        %677 = vadd.xlane.f32.xlu0 %v676
        %v678 = vpop.xlane.xlu0 %677
        %v679 = vrcp.pop %v678
        %v680 = vmul.f32 %v678, %v679
        %v681 = vsub.f32 1.0, %v680
        %v682 = vmul.f32 %v679, %v681
        %v683 = vadd.f32 %v679, %v682
        %vm684 = vweird.f32 %v678
        %vm685 = vweird.f32 %v679
        %vm686 = vmor %vm684, %vm685
        %v687 = vsel %vm686, %v679, %v683
        %v688 = vand.u32 2147483647, %v678
        %vm689 = vcmp.eq.f32.partialorder %v688, 8.507059e+37
        %v690 = vand.u32 %v678, 2147483648
        %v691 = vor.u32 1.1754944e-38, %v690
        %v692 = vsel %vm689, %v691, %v687
        %v694 = vsel %vm643, %v675, 0
        %696 = vmatpush.msra.mxu0 0.0
        %697 = vmatpush.msra.mxu0 0.0
        %698 = vmatpush.msra.mxu0 0.0
        %699 = vmatpush.msra.mxu0 0.0
        %700 = vmatpush.msra.mxu0 0.0
        %701 = vmatpush.msra.mxu0 0.0
        %702 = vmatpush.msra.mxu0 0.0
        %703 = vmatpush.msra.mxu0 0.0
        %704 = vmatpush.msra.mxu0 0.0
        %705 = vmatpush.msra.mxu0 0.0
        %706 = vmatpush.msra.mxu0 0.0
        %707 = vmatpush.msra.mxu0 0.0
        %708 = vmatpush.msra.mxu0 0.0
        %709 = vmatpush.msra.mxu0 0.0
        %710 = vmatpush.msra.mxu0 0.0
        %711 = vmatpush.msra.mxu0 %v642
        %712 = vmatmul.f32.gmra.mxu0 %v694
        %v713 = vpop.f32.mrf.mxu0
        %v714 = vadd.f32 0.0, %v713
        %715 = vdwg.mxu0
        %v716 = vmul.f32 %v714, %v692
        %v717 = vld [vmem:[%s5] sm:$0xff]
        %v719 = vsel %vm643, %v716, 0
        %721 = vmatpush.msra.mxu0 0.0
        %722 = vmatpush.msra.mxu0 0.0
        %723 = vmatpush.msra.mxu0 0.0
        %724 = vmatpush.msra.mxu0 0.0
        %725 = vmatpush.msra.mxu0 0.0
        %726 = vmatpush.msra.mxu0 0.0
        %727 = vmatpush.msra.mxu0 0.0
        %728 = vmatpush.msra.mxu0 0.0
        %729 = vmatpush.msra.mxu0 0.0
        %730 = vmatpush.msra.mxu0 0.0
        %731 = vmatpush.msra.mxu0 0.0
        %732 = vmatpush.msra.mxu0 0.0
        %733 = vmatpush.msra.mxu0 0.0
        %734 = vmatpush.msra.mxu0 0.0
        %735 = vmatpush.msra.mxu0 0.0
        %736 = vmatpush.msra.mxu0 %v717
        %737 = vmatmul.f32.gmra.mxu0 %v719
        %v738 = vpop.f32.mrf.mxu0
        %v739 = vadd.f32 0.0, %v738
        %740 = vdwg.mxu0
        %v741 = vadd.f32 %v605, %v739
        %s742 = scalar_lea.vmem %s3, 32
        %v743 = vld [vmem:[%s742] sm:$0xff]
        %v744 = vld [vmem:[%s742 + $0x8] sm:$0xff]
        %v745 = vld [vmem:[%s742 + $0x10] sm:$0xff]
        %v746 = vld [vmem:[%s742 + $0x18] sm:$0xff]
        %s747 = scalar_lea.vmem %s4, 1
        %v748 = vld [vmem:[%s747] sm:$0x1]
        %v750 = vperm.slane %v748, 0
        %752 = vmatpush.msra.mxu0 0.0
        %753 = vmatpush.msra.mxu0 0.0
        %754 = vmatpush.msra.mxu0 0.0
        %755 = vmatpush.msra.mxu0 0.0
        %756 = vmatpush.msra.mxu0 0.0
        %757 = vmatpush.msra.mxu0 0.0
        %758 = vmatpush.msra.mxu0 0.0
        %759 = vmatpush.msra.mxu0 0.0
        %760 = vmatpush.msra.mxu0 0.0
        %761 = vmatpush.msra.mxu0 0.0
        %762 = vmatpush.msra.mxu0 0.0
        %763 = vmatpush.msra.mxu0 0.0
        %764 = vmatpush.msra.mxu0 %v746
        %765 = vmatpush.msra.mxu0 %v745
        %766 = vmatpush.msra.mxu0 %v744
        %767 = vmatpush.msra.mxu0 %v743
        %768 = vmatmul.f32.gmra.mxu0 %v617
        %v769 = vpop.f32.mrf.mxu0
        %v770 = vadd.f32 %v750, %v769
        %771 = vdwg.mxu0
        %v772 = vmul.f32 %v770, 0.35355338
        %s773 = scalar_lea.vmem [#allocation2], 8
        %v774 = vld [vmem:[%s773] sm:$0xff]
        %s775 = scalar_lea.vmem [#allocation2], 40
        %v776 = vld [vmem:[%s775] sm:$0xff]
        %v778 = vsel %vm643, %v772, 0
        %v781 = vsel %vm643, %v774, 0
        %783 = vmatpush.xpose.msra.mxu0 0.0
        %784 = vmatpush.xpose.msra.mxu0 0.0
        %785 = vmatpush.xpose.msra.mxu0 0.0
        %786 = vmatpush.xpose.msra.mxu0 0.0
        %787 = vmatpush.xpose.msra.mxu0 0.0
        %788 = vmatpush.xpose.msra.mxu0 0.0
        %789 = vmatpush.xpose.msra.mxu0 0.0
        %790 = vmatpush.xpose.msra.mxu0 0.0
        %791 = vmatpush.xpose.msra.mxu0 0.0
        %792 = vmatpush.xpose.msra.mxu0 0.0
        %793 = vmatpush.xpose.msra.mxu0 0.0
        %794 = vmatpush.xpose.msra.mxu0 0.0
        %795 = vmatpush.xpose.msra.mxu0 0.0
        %796 = vmatpush.xpose.msra.mxu0 0.0
        %797 = vmatpush.xpose.msra.mxu0 0.0
        %798 = vmatpush.xpose.msra.mxu0 %v781
        %799 = vmatmul.f32.gmra.mxu0 %v778
        %v800 = vpop.f32.mrf.mxu0
        %v801 = vadd.f32 0.0, %v800
        %802 = vdwg.mxu0
        %v803 = vsel %vm643, %v801, -inf
        %804 = vmax.xlane.f32.xlu0 %v803
        %v805 = vpop.xlane.xlu0 %804
        %v806 = vsub.f32 %v801, %v805
        %v807 = vmul.f32 %v806, 1.442695
        %v808 = vpow.pop %v807
        %v809 = vsel %vm643, %v808, 0.0
        %810 = vadd.xlane.f32.xlu0 %v809
        %v811 = vpop.xlane.xlu0 %810
        %v812 = vrcp.pop %v811
        %v813 = vmul.f32 %v811, %v812
        %v814 = vsub.f32 1.0, %v813
        %v815 = vmul.f32 %v812, %v814
        %v816 = vadd.f32 %v812, %v815
        %vm817 = vweird.f32 %v811
        %vm818 = vweird.f32 %v812
        %vm819 = vmor %vm817, %vm818
        %v820 = vsel %vm819, %v812, %v816
        %v821 = vand.u32 2147483647, %v811
        %vm822 = vcmp.eq.f32.partialorder %v821, 8.507059e+37
        %v823 = vand.u32 %v811, 2147483648
        %v824 = vor.u32 1.1754944e-38, %v823
        %v825 = vsel %vm822, %v824, %v820
        %v827 = vsel %vm643, %v808, 0
        %829 = vmatpush.msra.mxu0 0.0
        %830 = vmatpush.msra.mxu0 0.0
        %831 = vmatpush.msra.mxu0 0.0
        %832 = vmatpush.msra.mxu0 0.0
        %833 = vmatpush.msra.mxu0 0.0
        %834 = vmatpush.msra.mxu0 0.0
        %835 = vmatpush.msra.mxu0 0.0
        %836 = vmatpush.msra.mxu0 0.0
        %837 = vmatpush.msra.mxu0 0.0
        %838 = vmatpush.msra.mxu0 0.0
        %839 = vmatpush.msra.mxu0 0.0
        %840 = vmatpush.msra.mxu0 0.0
        %841 = vmatpush.msra.mxu0 0.0
        %842 = vmatpush.msra.mxu0 0.0
        %843 = vmatpush.msra.mxu0 0.0
        %844 = vmatpush.msra.mxu0 %v776
        %845 = vmatmul.f32.gmra.mxu0 %v827
        %v846 = vpop.f32.mrf.mxu0
        %v847 = vadd.f32 0.0, %v846
        %848 = vdwg.mxu0
        %v849 = vmul.f32 %v847, %v825
        %s850 = scalar_lea.vmem %s5, 8
        %v851 = vld [vmem:[%s850] sm:$0xff]
        %v853 = vsel %vm643, %v849, 0
        %855 = vmatpush.msra.mxu0 0.0
        %856 = vmatpush.msra.mxu0 0.0
        %857 = vmatpush.msra.mxu0 0.0
        %858 = vmatpush.msra.mxu0 0.0
        %859 = vmatpush.msra.mxu0 0.0
        %860 = vmatpush.msra.mxu0 0.0
        %861 = vmatpush.msra.mxu0 0.0
        %862 = vmatpush.msra.mxu0 0.0
        %863 = vmatpush.msra.mxu0 0.0
        %864 = vmatpush.msra.mxu0 0.0
        %865 = vmatpush.msra.mxu0 0.0
        %866 = vmatpush.msra.mxu0 0.0
        %867 = vmatpush.msra.mxu0 0.0
        %868 = vmatpush.msra.mxu0 0.0
        %869 = vmatpush.msra.mxu0 0.0
        %870 = vmatpush.msra.mxu0 %v851
        %871 = vmatmul.f32.gmra.mxu0 %v853
        %v872 = vpop.f32.mrf.mxu0
        %v873 = vadd.f32 0.0, %v872
        %874 = vdwg.mxu0
        %v875 = vadd.f32 %v741, %v873
        %s876 = scalar_lea.vmem %s3, 64
        %v877 = vld [vmem:[%s876] sm:$0xff]
        %v878 = vld [vmem:[%s876 + $0x8] sm:$0xff]
        %v879 = vld [vmem:[%s876 + $0x10] sm:$0xff]
        %v880 = vld [vmem:[%s876 + $0x18] sm:$0xff]
        %s881 = scalar_lea.vmem %s4, 2
        %v882 = vld [vmem:[%s881] sm:$0x1]
        %v884 = vperm.slane %v882, 0
        %886 = vmatpush.msra.mxu0 0.0
        %887 = vmatpush.msra.mxu0 0.0
        %888 = vmatpush.msra.mxu0 0.0
        %889 = vmatpush.msra.mxu0 0.0
        %890 = vmatpush.msra.mxu0 0.0
        %891 = vmatpush.msra.mxu0 0.0
        %892 = vmatpush.msra.mxu0 0.0
        %893 = vmatpush.msra.mxu0 0.0
        %894 = vmatpush.msra.mxu0 0.0
        %895 = vmatpush.msra.mxu0 0.0
        %896 = vmatpush.msra.mxu0 0.0
        %897 = vmatpush.msra.mxu0 0.0
        %898 = vmatpush.msra.mxu0 %v880
        %899 = vmatpush.msra.mxu0 %v879
        %900 = vmatpush.msra.mxu0 %v878
        %901 = vmatpush.msra.mxu0 %v877
        %902 = vmatmul.f32.gmra.mxu0 %v617
        %v903 = vpop.f32.mrf.mxu0
        %v904 = vadd.f32 %v884, %v903
        %905 = vdwg.mxu0
        %v906 = vmul.f32 %v904, 0.35355338
        %s907 = scalar_lea.vmem [#allocation2], 16
        %v908 = vld [vmem:[%s907] sm:$0xff]
        %s909 = scalar_lea.vmem [#allocation2], 48
        %v910 = vld [vmem:[%s909] sm:$0xff]
        %v912 = vsel %vm643, %v906, 0
        %v915 = vsel %vm643, %v908, 0
        %917 = vmatpush.xpose.msra.mxu0 0.0
        %918 = vmatpush.xpose.msra.mxu0 0.0
        %919 = vmatpush.xpose.msra.mxu0 0.0
        %920 = vmatpush.xpose.msra.mxu0 0.0
        %921 = vmatpush.xpose.msra.mxu0 0.0
        %922 = vmatpush.xpose.msra.mxu0 0.0
        %923 = vmatpush.xpose.msra.mxu0 0.0
        %924 = vmatpush.xpose.msra.mxu0 0.0
        %925 = vmatpush.xpose.msra.mxu0 0.0
        %926 = vmatpush.xpose.msra.mxu0 0.0
        %927 = vmatpush.xpose.msra.mxu0 0.0
        %928 = vmatpush.xpose.msra.mxu0 0.0
        %929 = vmatpush.xpose.msra.mxu0 0.0
        %930 = vmatpush.xpose.msra.mxu0 0.0
        %931 = vmatpush.xpose.msra.mxu0 0.0
        %932 = vmatpush.xpose.msra.mxu0 %v915
        %933 = vmatmul.f32.gmra.mxu0 %v912
        %v934 = vpop.f32.mrf.mxu0
        %v935 = vadd.f32 0.0, %v934
        %936 = vdwg.mxu0
        %v937 = vsel %vm643, %v935, -inf
        %938 = vmax.xlane.f32.xlu0 %v937
        %v939 = vpop.xlane.xlu0 %938
        %v940 = vsub.f32 %v935, %v939
        %v941 = vmul.f32 %v940, 1.442695
        %v942 = vpow.pop %v941
        %v943 = vsel %vm643, %v942, 0.0
        %944 = vadd.xlane.f32.xlu0 %v943
        %v945 = vpop.xlane.xlu0 %944
        %v946 = vrcp.pop %v945
        %v947 = vmul.f32 %v945, %v946
        %v948 = vsub.f32 1.0, %v947
        %v949 = vmul.f32 %v946, %v948
        %v950 = vadd.f32 %v946, %v949
        %vm951 = vweird.f32 %v945
        %vm952 = vweird.f32 %v946
        %vm953 = vmor %vm951, %vm952
        %v954 = vsel %vm953, %v946, %v950
        %v955 = vand.u32 2147483647, %v945
        %vm956 = vcmp.eq.f32.partialorder %v955, 8.507059e+37
        %v957 = vand.u32 %v945, 2147483648
        %v958 = vor.u32 1.1754944e-38, %v957
        %v959 = vsel %vm956, %v958, %v954
        %v961 = vsel %vm643, %v942, 0
        %963 = vmatpush.msra.mxu0 0.0
        %964 = vmatpush.msra.mxu0 0.0
        %965 = vmatpush.msra.mxu0 0.0
        %966 = vmatpush.msra.mxu0 0.0
        %967 = vmatpush.msra.mxu0 0.0
        %968 = vmatpush.msra.mxu0 0.0
        %969 = vmatpush.msra.mxu0 0.0
        %970 = vmatpush.msra.mxu0 0.0
        %971 = vmatpush.msra.mxu0 0.0
        %972 = vmatpush.msra.mxu0 0.0
        %973 = vmatpush.msra.mxu0 0.0
        %974 = vmatpush.msra.mxu0 0.0
        %975 = vmatpush.msra.mxu0 0.0
        %976 = vmatpush.msra.mxu0 0.0
        %977 = vmatpush.msra.mxu0 0.0
        %978 = vmatpush.msra.mxu0 %v910
        %979 = vmatmul.f32.gmra.mxu0 %v961
        %v980 = vpop.f32.mrf.mxu0
        %v981 = vadd.f32 0.0, %v980
        %982 = vdwg.mxu0
        %v983 = vmul.f32 %v981, %v959
        %s984 = scalar_lea.vmem %s5, 16
        %v985 = vld [vmem:[%s984] sm:$0xff]
        %v987 = vsel %vm643, %v983, 0
        %989 = vmatpush.msra.mxu0 0.0
        %990 = vmatpush.msra.mxu0 0.0
        %991 = vmatpush.msra.mxu0 0.0
        %992 = vmatpush.msra.mxu0 0.0
        %993 = vmatpush.msra.mxu0 0.0
        %994 = vmatpush.msra.mxu0 0.0
        %995 = vmatpush.msra.mxu0 0.0
        %996 = vmatpush.msra.mxu0 0.0
        %997 = vmatpush.msra.mxu0 0.0
        %998 = vmatpush.msra.mxu0 0.0
        %999 = vmatpush.msra.mxu0 0.0
        %1000 = vmatpush.msra.mxu0 0.0
        %1001 = vmatpush.msra.mxu0 0.0
        %1002 = vmatpush.msra.mxu0 0.0
        %1003 = vmatpush.msra.mxu0 0.0
        %1004 = vmatpush.msra.mxu0 %v985
        %1005 = vmatmul.f32.gmra.mxu0 %v987
        %v1006 = vpop.f32.mrf.mxu0
        %v1007 = vadd.f32 0.0, %v1006
        %1008 = vdwg.mxu0
        %v1009 = vadd.f32 %v875, %v1007
        %s1010 = scalar_lea.vmem %s3, 96
        %v1011 = vld [vmem:[%s1010] sm:$0xff]
        %v1012 = vld [vmem:[%s1010 + $0x8] sm:$0xff]
        %v1013 = vld [vmem:[%s1010 + $0x10] sm:$0xff]
        %v1014 = vld [vmem:[%s1010 + $0x18] sm:$0xff]
        %s1015 = scalar_lea.vmem %s4, 3
        %v1016 = vld [vmem:[%s1015] sm:$0x1]
        %v1018 = vperm.slane %v1016, 0
        %1020 = vmatpush.msra.mxu0 0.0
        %1021 = vmatpush.msra.mxu0 0.0
        %1022 = vmatpush.msra.mxu0 0.0
        %1023 = vmatpush.msra.mxu0 0.0
        %1024 = vmatpush.msra.mxu0 0.0
        %1025 = vmatpush.msra.mxu0 0.0
        %1026 = vmatpush.msra.mxu0 0.0
        %1027 = vmatpush.msra.mxu0 0.0
        %1028 = vmatpush.msra.mxu0 0.0
        %1029 = vmatpush.msra.mxu0 0.0
        %1030 = vmatpush.msra.mxu0 0.0
        %1031 = vmatpush.msra.mxu0 0.0
        %1032 = vmatpush.msra.mxu0 %v1014
        %1033 = vmatpush.msra.mxu0 %v1013
        %1034 = vmatpush.msra.mxu0 %v1012
        %1035 = vmatpush.msra.mxu0 %v1011
        %1036 = vmatmul.f32.gmra.mxu0 %v617
        %v1037 = vpop.f32.mrf.mxu0
        %v1038 = vadd.f32 %v1018, %v1037
        %1039 = vdwg.mxu0
        %v1040 = vmul.f32 %v1038, 0.35355338
        %s1041 = scalar_lea.vmem [#allocation2], 24
        %v1042 = vld [vmem:[%s1041] sm:$0xff]
        %s1043 = scalar_lea.vmem [#allocation2], 56
        %v1044 = vld [vmem:[%s1043] sm:$0xff]
        %v1046 = vsel %vm643, %v1040, 0
        %v1049 = vsel %vm643, %v1042, 0
        %1051 = vmatpush.xpose.msra.mxu0 0.0
        %1052 = vmatpush.xpose.msra.mxu0 0.0
        %1053 = vmatpush.xpose.msra.mxu0 0.0
        %1054 = vmatpush.xpose.msra.mxu0 0.0
        %1055 = vmatpush.xpose.msra.mxu0 0.0
        %1056 = vmatpush.xpose.msra.mxu0 0.0
        %1057 = vmatpush.xpose.msra.mxu0 0.0
        %1058 = vmatpush.xpose.msra.mxu0 0.0
        %1059 = vmatpush.xpose.msra.mxu0 0.0
        %1060 = vmatpush.xpose.msra.mxu0 0.0
        %1061 = vmatpush.xpose.msra.mxu0 0.0
        %1062 = vmatpush.xpose.msra.mxu0 0.0
        %1063 = vmatpush.xpose.msra.mxu0 0.0
        %1064 = vmatpush.xpose.msra.mxu0 0.0
        %1065 = vmatpush.xpose.msra.mxu0 0.0
        %1066 = vmatpush.xpose.msra.mxu0 %v1049
        %1067 = vmatmul.f32.gmra.mxu0 %v1046
        %v1068 = vpop.f32.mrf.mxu0
        %v1069 = vadd.f32 0.0, %v1068
        %1070 = vdwg.mxu0
        %v1071 = vsel %vm643, %v1069, -inf
        %1072 = vmax.xlane.f32.xlu0 %v1071
        %v1073 = vpop.xlane.xlu0 %1072
        %v1074 = vsub.f32 %v1069, %v1073
        %v1075 = vmul.f32 %v1074, 1.442695
        %v1076 = vpow.pop %v1075
        %v1077 = vsel %vm643, %v1076, 0.0
        %1078 = vadd.xlane.f32.xlu0 %v1077
        %v1079 = vpop.xlane.xlu0 %1078
        %v1080 = vrcp.pop %v1079
        %v1081 = vmul.f32 %v1079, %v1080
        %v1082 = vsub.f32 1.0, %v1081
        %v1083 = vmul.f32 %v1080, %v1082
        %v1084 = vadd.f32 %v1080, %v1083
        %vm1085 = vweird.f32 %v1079
        %vm1086 = vweird.f32 %v1080
        %vm1087 = vmor %vm1085, %vm1086
        %v1088 = vsel %vm1087, %v1080, %v1084
        %v1089 = vand.u32 2147483647, %v1079
        %vm1090 = vcmp.eq.f32.partialorder %v1089, 8.507059e+37
        %v1091 = vand.u32 %v1079, 2147483648
        %v1092 = vor.u32 1.1754944e-38, %v1091
        %v1093 = vsel %vm1090, %v1092, %v1088
        %v1095 = vsel %vm643, %v1076, 0
        %1097 = vmatpush.msra.mxu0 0.0
        %1098 = vmatpush.msra.mxu0 0.0
        %1099 = vmatpush.msra.mxu0 0.0
        %1100 = vmatpush.msra.mxu0 0.0
        %1101 = vmatpush.msra.mxu0 0.0
        %1102 = vmatpush.msra.mxu0 0.0
        %1103 = vmatpush.msra.mxu0 0.0
        %1104 = vmatpush.msra.mxu0 0.0
        %1105 = vmatpush.msra.mxu0 0.0
        %1106 = vmatpush.msra.mxu0 0.0
        %1107 = vmatpush.msra.mxu0 0.0
        %1108 = vmatpush.msra.mxu0 0.0
        %1109 = vmatpush.msra.mxu0 0.0
        %1110 = vmatpush.msra.mxu0 0.0
        %1111 = vmatpush.msra.mxu0 0.0
        %1112 = vmatpush.msra.mxu0 %v1044
        %1113 = vmatmul.f32.gmra.mxu0 %v1095
        %v1114 = vpop.f32.mrf.mxu0
        %v1115 = vadd.f32 0.0, %v1114
        %1116 = vdwg.mxu0
        %v1117 = vmul.f32 %v1115, %v1093
        %s1118 = scalar_lea.vmem %s5, 24
        %v1119 = vld [vmem:[%s1118] sm:$0xff]
        %v1121 = vsel %vm643, %v1117, 0
        %1123 = vmatpush.msra.mxu0 0.0
        %1124 = vmatpush.msra.mxu0 0.0
        %1125 = vmatpush.msra.mxu0 0.0
        %1126 = vmatpush.msra.mxu0 0.0
        %1127 = vmatpush.msra.mxu0 0.0
        %1128 = vmatpush.msra.mxu0 0.0
        %1129 = vmatpush.msra.mxu0 0.0
        %1130 = vmatpush.msra.mxu0 0.0
        %1131 = vmatpush.msra.mxu0 0.0
        %1132 = vmatpush.msra.mxu0 0.0
        %1133 = vmatpush.msra.mxu0 0.0
        %1134 = vmatpush.msra.mxu0 0.0
        %1135 = vmatpush.msra.mxu0 0.0
        %1136 = vmatpush.msra.mxu0 0.0
        %1137 = vmatpush.msra.mxu0 0.0
        %1138 = vmatpush.msra.mxu0 %v1119
        %1139 = vmatmul.f32.gmra.mxu0 %v1121
        %v1140 = vpop.f32.mrf.mxu0
        %v1141 = vadd.f32 0.0, %v1140
        %1142 = vdwg.mxu0
        %v1143 = vadd.f32 %v1009, %v1141
        %1144 = vst.msk [vmem:[%s317] sm:$0xff] %vm615, %v1143
        %s1145 = sand.u32 %s207, 1
        %s1146 = scalar_lea.sflag [#allocation4], %s1145
        %s1147 = sand.u32 %s207, 1
        %s1148 = smul.addr %s1147, 8
        %s1149 = scalar_lea.vmem [#allocation3], %s1148
        // Predicated region
        $region53: #{tpu_custom_call.1} parent=47 // pred_check
          %p1150 = pneg %p217
        $region54: #{tpu_custom_call.1} parent=47 // pred_check_branch
          %1152 = sbr.rel (%p1150) target = $region56
        $region55: #{tpu_custom_call.1} parent=47 // pred_region
          %1154 = vsyncadd %s1146, 0
          %s1155 = sadd.s32 %s26, %s25
          %s1156 = smul.addr %s1155, 8
          %s1157 = scalar_lea.hbm %s7, %s1156
          %s1159 = sshll.u32 %s1149, 4
          %s1160 = int_to_ptr.vmem [resolvable:$true] %s1159
          %s1161 = sshll.u32 %s1157, 4
          %s1162 = int_to_ptr.hbm [resolvable:$true] %s1161
          %1164 = dma.vmem_to_hbm [thread:$0]  %s1160, 128, %s1162, %s1146
        $region56: #{tpu_custom_call.1} parent=47 // pred_fallthru
          _
      $region48: #{tpu_custom_call.1} parent=5 // pred_fallthru
        _
      %p1165 = scmp.le.s32.totalorder 2, %s16
      // Predicated region
      $region57: #{tpu_custom_call.1} parent=5 // pred_check
        %p1166 = pneg %p1165
      $region58: #{tpu_custom_call.1} parent=5 // pred_check_branch
        %1168 = sbr.rel (%p1166) target = $region60
      $region59: #{tpu_custom_call.1} parent=5 // pred_region
        %s1169 = ssub.s32 %s16, 2
        // Predicated region
        $region61: #{tpu_custom_call.1} parent=59 // pred_check
          %p1170 = pneg %p223
        $region62: #{tpu_custom_call.1} parent=59 // pred_check_branch
          %1172 = sbr.rel (%p1170) target = $region64
        $region63: #{tpu_custom_call.1} parent=59 // pred_region
          %s1173 = sand.u32 %s208, 1
          %s1174 = scalar_lea.sflag [#allocation4], %s1173
          %s1175 = sand.u32 %s208, 1
          %s1176 = smul.addr %s1175, 8
          %s1177 = scalar_lea.vmem [#allocation3], %s1176
          %1179 = dma.done %s1174, 128
        $region64: #{tpu_custom_call.1} parent=59 // pred_fallthru
          _
      $region60: #{tpu_custom_call.1} parent=5 // pred_fallthru
        _
    $region6: #{tpu_custom_call.1} parent=1 // loop_footer
      %s20 = sadd.s32 1, %s16
    $region7: #{tpu_custom_call.1} parent=1 // loop_footer_branch
      %15 = sbr.rel target = $region3
    $region8: #{tpu_custom_call.1} parent=1 // loop_exit
      _
    %1180 = vsyncpa [#allocation4], 1
    %s1181 = scalar_lea.sflag [#allocation4], 1
    %1182 = vsyncpa %s1181, 1

</llo_original>
